<compile_context>
chip_gen: v7x
topology: tpu7x:2x2x1
jax: 0.10.0
libtpu: 0.0.40
codegen_flags: <defaults>
</compile_context>

<pallas_src>
import jax
import jax.numpy as jnp
from jax import lax
from jax.experimental import pallas as pl
from jax.experimental.pallas import tpu as pltpu


_LANES = 128
_POOL_SHIFTS = ((0, 0), (0, 1), (1, 0), (1, 1))

_CompilerParams = getattr(pltpu, "CompilerParams", None) or getattr(
    pltpu, "TPUCompilerParams", None)


def _round_up(v, m):
    return (v + m - 1) // m * m


def _compiler_params():
    if _CompilerParams is None:
        return None
    return _CompilerParams(dimension_semantics=("parallel",),
                           vmem_limit_bytes=32 * 1024 * 1024)


def _pick_tm(m, max_tm=512):
    return min(max_tm, _round_up(m, 8))


def _pad_rows(x, rows):
    m = x.shape[0]
    if rows != m:
        x = jnp.pad(x, ((0, rows - m), (0, 0)))
    return x


# ----------------------------------------------------------------------------- kernels

def _conv_pool_kernel(x_ref, w_ref, b_ref, o_ref):
    # x: (tm, K) bf16 patches (6x6/stride-2 windows), w: (K, 4*128) bf16 (4 pool shifts stacked
    # on lanes), b: (1, 128) f32.  o = maxpool2(relu(conv5x5(x) + b)), lane-dense (tm, 128).
    acc = jnp.dot(x_ref[...], w_ref[...], preferred_element_type=jnp.float32)  # (tm, 512)
    m = jnp.maximum(jnp.maximum(acc[:, 0:128], acc[:, 128:256]),
                    jnp.maximum(acc[:, 256:384], acc[:, 384:512]))
    o_ref[...] = jnp.maximum(m + b_ref[...], 0.0).astype(o_ref.dtype)


def _mlp_kernel(x_ref, w1_ref, b1_ref, w2_ref, b2_ref, w3_ref, b3_ref, o_ref):
    # Fused FC120 -> ReLU -> FC84 -> ReLU -> FC10 (all padded to 128 lanes).  Weights stay
    # resident in VMEM; intermediates never leave VMEM.
    dt = x_ref.dtype
    h = jnp.dot(x_ref[...], w1_ref[...], preferred_element_type=jnp.float32) + b1_ref[...]
    h = jnp.maximum(h, 0.0).astype(dt)
    h = jnp.dot(h, w2_ref[...], preferred_element_type=jnp.float32) + b2_ref[...]
    h = jnp.maximum(h, 0.0).astype(dt)
    out = jnp.dot(h, w3_ref[...], preferred_element_type=jnp.float32) + b3_ref[...]
    o_ref[...] = out.astype(o_ref.dtype)


# ----------------------------------------------------------------------------- pallas wrappers

def _conv_pool_matmul(patches, wstack, bias):
    m, k = patches.shape
    tm = _pick_tm(m)
    mp = _round_up(m, tm)
    patches = _pad_rows(patches, mp)
    out = pl.pallas_call(
        _conv_pool_kernel,
        out_shape=jax.ShapeDtypeStruct((mp, _LANES), jnp.bfloat16),
        grid=(mp // tm,),
        in_specs=[
            pl.BlockSpec((tm, k), lambda i: (i, 0)),
            pl.BlockSpec((k, 4 * _LANES), lambda i: (0, 0)),
            pl.BlockSpec((1, _LANES), lambda i: (0, 0)),
        ],
        out_specs=pl.BlockSpec((tm, _LANES), lambda i: (i, 0)),
        compiler_params=_compiler_params(),
    )(patches, wstack, bias)
    return out[:m]


def _mlp_head(x, w1, b1, w2, b2, w3, b3):
    m, k = x.shape
    tm = _pick_tm(m)
    mp = _round_up(m, tm)
    x = _pad_rows(x, mp)
    out = pl.pallas_call(
        _mlp_kernel,
        out_shape=jax.ShapeDtypeStruct((mp, _LANES), jnp.float32),
        grid=(mp // tm,),
        in_specs=[
            pl.BlockSpec((tm, k), lambda i: (i, 0)),
            pl.BlockSpec((k, _LANES), lambda i: (0, 0)),
            pl.BlockSpec((1, _LANES), lambda i: (0, 0)),
            pl.BlockSpec((_LANES, _LANES), lambda i: (0, 0)),
            pl.BlockSpec((1, _LANES), lambda i: (0, 0)),
            pl.BlockSpec((_LANES, _LANES), lambda i: (0, 0)),
            pl.BlockSpec((1, _LANES), lambda i: (0, 0)),
        ],
        out_specs=pl.BlockSpec((tm, _LANES), lambda i: (i, 0)),
        compiler_params=_compiler_params(),
    )(x, w1, b1, w2, b2, w3, b3)
    return out[:m]


# ----------------------------------------------------------------------------- weight / patch prep
# (tiny tensors; runs once per jit trace and costs ~nothing at runtime -- could also be hoisted)

def _prep_conv_pool(w, b):
    """Fold conv(5x5, VALID) + ReLU + MaxPool2 into one matmul's weights.

    Returns (wstack, bias): wstack (K_pad, 4*128) bf16 where column block s holds the conv
    weight placed at pool offset _POOL_SHIFTS[s] inside a 6x6 window (K ordered (cin, wi, wj));
    bias (1, 128) f32 with zero padding so padded lanes stay exactly 0 after ReLU.
    """
    cout, cin, kh, kw = w.shape                 # (6,1,5,5) / (16,6,5,5)
    wh, ww = kh + 1, kw + 1                     # 6x6 fused window (conv k=5 + pool 2, stride 2)
    wt = jnp.transpose(w.astype(jnp.float32), (1, 2, 3, 0))      # (cin, 5, 5, cout)
    wb = jnp.zeros((4, cin, wh, ww, cout), jnp.float32)
    for s, (di, dj) in enumerate(_POOL_SHIFTS):
        wb = wb.at[s, :, di:di + kh, dj:dj + kw, :].set(wt)
    k6 = cin * wh * ww
    k_pad = _round_up(k6, 8)
    wb = wb.reshape(4, k6, cout)
    wb = jnp.pad(wb, ((0, 0), (0, k_pad - k6), (0, _LANES - cout)))   # (4, K_pad, 128)
    wstack = jnp.transpose(wb, (1, 0, 2)).reshape(k_pad, 4 * _LANES)  # col block s = shift s
    bias = jnp.pad(b.astype(jnp.float32), (0, _LANES - cout)).reshape(1, _LANES)
    return wstack.astype(jnp.bfloat16), bias


def _pooled_conv_patches(x_nchw):
    """6x6/stride-2 patches of an NCHW tensor -> (N*Ho*Wo, K_pad) bf16, features ordered
    (c, wi, wj).  One XLA op; Ho/Wo equal the post-pool spatial dims of conv5x5+pool2."""
    n = x_nchw.shape[0]
    p = lax.conv_general_dilated_patches(
        x_nchw, filter_shape=(6, 6), window_strides=(2, 2), padding="VALID")
    _, k, ho, wo = p.shape                      # k == C*36, channel-major ordering
    p = jnp.transpose(p, (0, 2, 3, 1)).reshape(n * ho * wo, k)
    k_pad = _round_up(k, 8)
    if k_pad != k:
        p = jnp.pad(p, ((0, 0), (0, k_pad - k)))
    return p.astype(jnp.bfloat16), ho, wo


def _prep_fc_head(fc1_w, fc1_b, fc2_w, fc2_b, fc3_w, fc3_b, *, n_ch, n_sp):
    """Pad/permute the FC stack to 128 lanes.  The torch Flatten order (c, h, w) vs the conv
    stage's activation layout (spatial rows, channel lanes) is folded into w1, so the
    activation only needs a free (N*n_sp, 128) -> (N, n_sp*128) reshape."""
    o1 = fc1_w.shape[0]
    w1 = fc1_w.astype(jnp.float32).reshape(o1, n_ch, n_sp)   # (o, c, sp)
    w1 = jnp.transpose(w1, (2, 1, 0))                        # (sp, c, o)
    w1 = jnp.pad(w1, ((0, 0), (0, _LANES - n_ch), (0, _LANES - o1)))
    w1 = w1.reshape(n_sp * _LANES, _LANES)                   # (2048, 128)
    b1 = jnp.pad(fc1_b.astype(jnp.float32), (0, _LANES - o1)).reshape(1, _LANES)

    o2, i2 = fc2_w.shape
    w2 = jnp.pad(fc2_w.astype(jnp.float32).T, ((0, _LANES - i2), (0, _LANES - o2)))
    b2 = jnp.pad(fc2_b.astype(jnp.float32), (0, _LANES - o2)).reshape(1, _LANES)

    o3, i3 = fc3_w.shape
    w3 = jnp.pad(fc3_w.astype(jnp.float32).T, ((0, _LANES - i3), (0, _LANES - o3)))
    b3 = jnp.pad(fc3_b.astype(jnp.float32), (0, _LANES - o3)).reshape(1, _LANES)
    return (w1.astype(jnp.bfloat16), b1, w2.astype(jnp.bfloat16), b2,
            w3.astype(jnp.bfloat16), b3)


# ----------------------------------------------------------------------------- model

def init_params(key):
    ks = jax.random.split(key, 10)

    def init(k, shape, fan_in):
        return jax.random.normal(k, shape, jnp.float32) * (1.0 / jnp.sqrt(fan_in))

    return {
        "conv1_w": init(ks[0], (6, 1, 5, 5), 25),
        "conv1_b": init(ks[1], (6,), 25),
        "conv2_w": init(ks[2], (16, 6, 5, 5), 150),
        "conv2_b": init(ks[3], (16,), 150),
        "fc1_w": init(ks[4], (120, 256), 256),     # torch Linear: (out, in)
        "fc1_b": init(ks[5], (120,), 256),
        "fc2_w": init(ks[6], (84, 120), 120),
        "fc2_b": init(ks[7], (84,), 120),
        "fc3_w": init(ks[8], (10, 84), 84),        # classifier head
        "fc3_b": init(ks[9], (10,), 84),
    }


def lenet5_forward(x, p):
    # x: (N, 1, 28, 28) float32, NCHW
    n = x.shape[0]
    cin2, cout2 = p["conv2_w"].shape[1], p["conv2_w"].shape[0]

    # -- stage 1: conv1(5x5) + ReLU + maxpool2, fused into one lane-dense matmul kernel
    w1s, b1p = _prep_conv_pool(p["conv1_w"], p["conv1_b"])
    pat1, h1, w1_ = _pooled_conv_patches(x.astype(jnp.float32))      # (N*144, 40)
    y1 = _conv_pool_matmul(pat1, w1s, b1p)                           # (N*144, 128) bf16

    # small relayout for the second patch extraction (lanes 6..127 are exact zeros)
    a1 = y1.reshape(n, h1, w1_, _LANES)[..., :cin2]
    a1 = jnp.transpose(a1, (0, 3, 1, 2))                             # (N, 6, 12, 12)

    # -- stage 2: conv2(5x5) + ReLU + maxpool2, same fused kernel
    w2s, b2p = _prep_conv_pool(p["conv2_w"], p["conv2_b"])
    pat2, h2, w2_ = _pooled_conv_patches(a1)                         # (N*16, 216)
    y2 = _conv_pool_matmul(pat2, w2s, b2p)                           # (N*16, 128) bf16

    # -- stage 3: Flatten + FC120 + ReLU + FC84 + ReLU + Linear(84,10), one fused kernel
    fw1, fb1, fw2, fb2, fw3, fb3 = _prep_fc_head(
        p["fc1_w"], p["fc1_b"], p["fc2_w"], p["fc2_b"], p["fc3_w"], p["fc3_b"],
        n_ch=cout2, n_sp=h2 * w2_)
    xf = y2.reshape(n, h2 * w2_ * _LANES)                            # (N, 2048), free reshape
    logits = _mlp_head(xf, fw1, fb1, fw2, fb2, fw3, fb3)             # (N, 128) f32
    return logits[:, :p["fc3_w"].shape[0]]                           # (N, 10)


# ----------------------------------------------------------------------------- pure-JAX reference

def _reference_forward(x, p):
    y = lax.conv_general_dilated(x, p["conv1_w"], (1, 1), "VALID")
    y = jax.nn.relu(y + p["conv1_b"].reshape(1, -1, 1, 1))
    n, c, h, w = y.shape
    y = y.reshape(n, c, h // 2, 2, w // 2, 2).max(axis=(3, 5))
    y = lax.conv_general_dilated(y, p["conv2_w"], (1, 1), "VALID")
    y = jax.nn.relu(y + p["conv2_b"].reshape(1, -1, 1, 1))
    n, c, h, w = y.shape
    y = y.reshape(n, c, h // 2, 2, w // 2, 2).max(axis=(3, 5))
    y = y.reshape(n, -1)
    y = jax.nn.relu(y @ p["fc1_w"].T + p["fc1_b"])
    y = jax.nn.relu(y @ p["fc2_w"].T + p["fc2_b"])
    return y @ p["fc3_w"].T + p["fc3_b"]


if __name__ == "__main__":
    key = jax.random.PRNGKey(0)
    k_x, k_p = jax.random.split(key)
    x = jax.random.normal(k_x, (2, 1, 28, 28), jnp.float32)
    params = init_params(k_p)

    fwd = jax.jit(lenet5_forward)
    out = fwd(x, params)
    jax.block_until_ready(out)
    assert out.shape == (2, 10) and out.dtype == jnp.float32

    # sanity-check the fused bf16 Pallas path against a pure-JAX f32 reference
    ref = _reference_forward(x, params)
    rel = jnp.linalg.norm(out - ref) / (jnp.linalg.norm(ref) + 1e-6)
    assert float(rel) < 5e-2, f"mismatch vs reference: rel L2 = {float(rel):.4f}"

    print("KERNEL_OK")
</pallas_src>

<mosaic_0001>
module attributes {stable_mosaic.version = 11 : i64} {
  func.func @_conv_pool_kernel(%arg0: i32, %arg1: memref<288x40xbf16, #tpu.memory_space<vmem>>, %arg2: memref<40x512xbf16, #tpu.memory_space<vmem>>, %arg3: memref<1x128xf32, #tpu.memory_space<vmem>>, %arg4: memref<288x128xbf16, #tpu.memory_space<vmem>>) attributes {dimension_semantics = [#tpu.dimension_semantics<parallel>], iteration_bounds = array<i64: 1>, scalar_prefetch = 0 : i64, scratch_operands = 0 : i64, tpu.core_type = #tpu.core_type<tc>, window_params = [{transform_indices = @transform_0, window_bounds = array<i64: 288, 40>}, {pipeline_mode = #tpu.pipeline_mode<synchronous>, transform_indices = @transform_1, window_bounds = array<i64: 40, 512>}, {pipeline_mode = #tpu.pipeline_mode<synchronous>, transform_indices = @transform_2, window_bounds = array<i64: 1, 128>}, {transform_indices = @transform_3, window_bounds = array<i64: 288, 128>}]} {
    %c0 = arith.constant 0 : index
    %c0_0 = arith.constant 0 : index
    %0 = vector.load %arg1[%c0, %c0_0] : memref<288x40xbf16, #tpu.memory_space<vmem>>, vector<288x40xbf16>
    %c0_1 = arith.constant 0 : index
    %c0_2 = arith.constant 0 : index
    %1 = vector.load %arg2[%c0_1, %c0_2] : memref<40x512xbf16, #tpu.memory_space<vmem>>, vector<40x512xbf16>
    %cst = arith.constant dense<0.000000e+00> : vector<288x512xf32>
    %2 = tpu.matmul %0, %1, %cst {dimension_numbers = #tpu.dot_dimension_numbers<[1], [0], [0], [1], [0, 0, 1, 1], [], []>} : vector<288x40xbf16>, vector<40x512xbf16>, vector<288x512xf32> -> vector<288x512xf32>
    %3 = vector.extract_strided_slice %2 {offsets = [0, 0], sizes = [288, 128], strides = [1, 1]} : vector<288x512xf32> to vector<288x128xf32>
    %4 = vector.extract_strided_slice %2 {offsets = [0, 128], sizes = [288, 128], strides = [1, 1]} : vector<288x512xf32> to vector<288x128xf32>
    %5 = arith.maximumf %3, %4 : vector<288x128xf32>
    %6 = vector.extract_strided_slice %2 {offsets = [0, 256], sizes = [288, 128], strides = [1, 1]} : vector<288x512xf32> to vector<288x128xf32>
    %7 = vector.extract_strided_slice %2 {offsets = [0, 384], sizes = [288, 128], strides = [1, 1]} : vector<288x512xf32> to vector<288x128xf32>
    %8 = arith.maximumf %6, %7 : vector<288x128xf32>
    %9 = arith.maximumf %5, %8 : vector<288x128xf32>
    %c0_3 = arith.constant 0 : index
    %c0_4 = arith.constant 0 : index
    %10 = vector.load %arg3[%c0_3, %c0_4] : memref<1x128xf32, #tpu.memory_space<vmem>>, vector<1x128xf32>
    %11 = vector.broadcast %10 : vector<1x128xf32> to vector<288x128xf32>
    %12 = arith.addf %9, %11 : vector<288x128xf32>
    %cst_5 = arith.constant 0.000000e+00 : f32
    %13 = vector.broadcast %cst_5 : f32 to vector<288x128xf32>
    %14 = arith.maximumf %12, %13 : vector<288x128xf32>
    %15 = arith.truncf %14 : vector<288x128xf32> to vector<288x128xbf16>
    %c0_6 = arith.constant 0 : index
    %c0_7 = arith.constant 0 : index
    %16 = vector.load %arg4[%c0_6, %c0_7] : memref<288x128xbf16, #tpu.memory_space<vmem>>, vector<288x128xbf16>
    tpu.vector_store %arg4[%c0_6, %c0_7], %15 {strides = array<i32>} : memref<288x128xbf16, #tpu.memory_space<vmem>>, vector<288x128xbf16>,
    return
  }
  func.func @transform_0(%arg0: i32) -> (i32, i32) {
    %c0_i32 = arith.constant 0 : i32
    %c0_i32_0 = arith.constant 0 : i32
    return %arg0, %c0_i32 : i32, i32
  }
  func.func @transform_1(%arg0: i32) -> (i32, i32) {
    %c0_i32 = arith.constant 0 : i32
    %c0_i32_0 = arith.constant 0 : i32
    %c0_i32_1 = arith.constant 0 : i32
    return %c0_i32, %c0_i32_0 : i32, i32
  }
  func.func @transform_2(%arg0: i32) -> (i32, i32) {
    %c0_i32 = arith.constant 0 : i32
    %c0_i32_0 = arith.constant 0 : i32
    %c0_i32_1 = arith.constant 0 : i32
    return %c0_i32, %c0_i32_0 : i32, i32
  }
  func.func @transform_3(%arg0: i32) -> (i32, i32) {
    %c0_i32 = arith.constant 0 : i32
    %c0_i32_0 = arith.constant 0 : i32
    return %arg0, %c0_i32 : i32, i32
  }
}

module attributes {stable_mosaic.version = 11 : i64} {
  func.func @_conv_pool_kernel(%arg0: i32, %arg1: memref<32x216xbf16, #tpu.memory_space<vmem>>, %arg2: memref<216x512xbf16, #tpu.memory_space<vmem>>, %arg3: memref<1x128xf32, #tpu.memory_space<vmem>>, %arg4: memref<32x128xbf16, #tpu.memory_space<vmem>>) attributes {dimension_semantics = [#tpu.dimension_semantics<parallel>], iteration_bounds = array<i64: 1>, scalar_prefetch = 0 : i64, scratch_operands = 0 : i64, tpu.core_type = #tpu.core_type<tc>, window_params = [{transform_indices = @transform_0, window_bounds = array<i64: 32, 216>}, {pipeline_mode = #tpu.pipeline_mode<synchronous>, transform_indices = @transform_1, window_bounds = array<i64: 216, 512>}, {pipeline_mode = #tpu.pipeline_mode<synchronous>, transform_indices = @transform_2, window_bounds = array<i64: 1, 128>}, {transform_indices = @transform_3, window_bounds = array<i64: 32, 128>}]} {
    %c0 = arith.constant 0 : index
    %c0_0 = arith.constant 0 : index
    %0 = vector.load %arg1[%c0, %c0_0] : memref<32x216xbf16, #tpu.memory_space<vmem>>, vector<32x216xbf16>
    %c0_1 = arith.constant 0 : index
    %c0_2 = arith.constant 0 : index
    %1 = vector.load %arg2[%c0_1, %c0_2] : memref<216x512xbf16, #tpu.memory_space<vmem>>, vector<216x512xbf16>
    %cst = arith.constant dense<0.000000e+00> : vector<32x512xf32>
    %2 = tpu.matmul %0, %1, %cst {dimension_numbers = #tpu.dot_dimension_numbers<[1], [0], [0], [1], [0, 0, 1, 1], [], []>} : vector<32x216xbf16>, vector<216x512xbf16>, vector<32x512xf32> -> vector<32x512xf32>
    %3 = vector.extract_strided_slice %2 {offsets = [0, 0], sizes = [32, 128], strides = [1, 1]} : vector<32x512xf32> to vector<32x128xf32>
    %4 = vector.extract_strided_slice %2 {offsets = [0, 128], sizes = [32, 128], strides = [1, 1]} : vector<32x512xf32> to vector<32x128xf32>
    %5 = arith.maximumf %3, %4 : vector<32x128xf32>
    %6 = vector.extract_strided_slice %2 {offsets = [0, 256], sizes = [32, 128], strides = [1, 1]} : vector<32x512xf32> to vector<32x128xf32>
    %7 = vector.extract_strided_slice %2 {offsets = [0, 384], sizes = [32, 128], strides = [1, 1]} : vector<32x512xf32> to vector<32x128xf32>
    %8 = arith.maximumf %6, %7 : vector<32x128xf32>
    %9 = arith.maximumf %5, %8 : vector<32x128xf32>
    %c0_3 = arith.constant 0 : index
    %c0_4 = arith.constant 0 : index
    %10 = vector.load %arg3[%c0_3, %c0_4] : memref<1x128xf32, #tpu.memory_space<vmem>>, vector<1x128xf32>
    %11 = vector.broadcast %10 : vector<1x128xf32> to vector<32x128xf32>
    %12 = arith.addf %9, %11 : vector<32x128xf32>
    %cst_5 = arith.constant 0.000000e+00 : f32
    %13 = vector.broadcast %cst_5 : f32 to vector<32x128xf32>
    %14 = arith.maximumf %12, %13 : vector<32x128xf32>
    %15 = arith.truncf %14 : vector<32x128xf32> to vector<32x128xbf16>
    %c0_6 = arith.constant 0 : index
    %c0_7 = arith.constant 0 : index
    %16 = vector.load %arg4[%c0_6, %c0_7] : memref<32x128xbf16, #tpu.memory_space<vmem>>, vector<32x128xbf16>
    tpu.vector_store %arg4[%c0_6, %c0_7], %15 {strides = array<i32>} : memref<32x128xbf16, #tpu.memory_space<vmem>>, vector<32x128xbf16>,
    return
  }
  func.func @transform_0(%arg0: i32) -> (i32, i32) {
    %c0_i32 = arith.constant 0 : i32
    %c0_i32_0 = arith.constant 0 : i32
    return %arg0, %c0_i32 : i32, i32
  }
  func.func @transform_1(%arg0: i32) -> (i32, i32) {
    %c0_i32 = arith.constant 0 : i32
    %c0_i32_0 = arith.constant 0 : i32
    %c0_i32_1 = arith.constant 0 : i32
    return %c0_i32, %c0_i32_0 : i32, i32
  }
  func.func @transform_2(%arg0: i32) -> (i32, i32) {
    %c0_i32 = arith.constant 0 : i32
    %c0_i32_0 = arith.constant 0 : i32
    %c0_i32_1 = arith.constant 0 : i32
    return %c0_i32, %c0_i32_0 : i32, i32
  }
  func.func @transform_3(%arg0: i32) -> (i32, i32) {
    %c0_i32 = arith.constant 0 : i32
    %c0_i32_0 = arith.constant 0 : i32
    return %arg0, %c0_i32 : i32, i32
  }
}

module attributes {stable_mosaic.version = 11 : i64} {
  func.func @_mlp_kernel(%arg0: i32, %arg1: memref<8x2048xbf16, #tpu.memory_space<vmem>>, %arg2: memref<2048x128xbf16, #tpu.memory_space<vmem>>, %arg3: memref<1x128xf32, #tpu.memory_space<vmem>>, %arg4: memref<128x128xbf16, #tpu.memory_space<vmem>>, %arg5: memref<1x128xf32, #tpu.memory_space<vmem>>, %arg6: memref<128x128xbf16, #tpu.memory_space<vmem>>, %arg7: memref<1x128xf32, #tpu.memory_space<vmem>>, %arg8: memref<8x128xf32, #tpu.memory_space<vmem>>) attributes {dimension_semantics = [#tpu.dimension_semantics<parallel>], iteration_bounds = array<i64: 1>, scalar_prefetch = 0 : i64, scratch_operands = 0 : i64, tpu.core_type = #tpu.core_type<tc>, window_params = [{transform_indices = @transform_0, window_bounds = array<i64: 8, 2048>}, {pipeline_mode = #tpu.pipeline_mode<synchronous>, transform_indices = @transform_1, window_bounds = array<i64: 2048, 128>}, {pipeline_mode = #tpu.pipeline_mode<synchronous>, transform_indices = @transform_2, window_bounds = array<i64: 1, 128>}, {pipeline_mode = #tpu.pipeline_mode<synchronous>, transform_indices = @transform_3, window_bounds = array<i64: 128, 128>}, {pipeline_mode = #tpu.pipeline_mode<synchronous>, transform_indices = @transform_4, window_bounds = array<i64: 1, 128>}, {pipeline_mode = #tpu.pipeline_mode<synchronous>, transform_indices = @transform_5, window_bounds = array<i64: 128, 128>}, {pipeline_mode = #tpu.pipeline_mode<synchronous>, transform_indices = @transform_6, window_bounds = array<i64: 1, 128>}, {transform_indices = @transform_7, window_bounds = array<i64: 8, 128>}]} {
    %c0 = arith.constant 0 : index
    %c0_0 = arith.constant 0 : index
    %0 = vector.load %arg1[%c0, %c0_0] : memref<8x2048xbf16, #tpu.memory_space<vmem>>, vector<8x2048xbf16>
    %c0_1 = arith.constant 0 : index
    %c0_2 = arith.constant 0 : index
    %1 = vector.load %arg2[%c0_1, %c0_2] : memref<2048x128xbf16, #tpu.memory_space<vmem>>, vector<2048x128xbf16>
    %cst = arith.constant dense<0.000000e+00> : vector<8x128xf32>
    %2 = tpu.matmul %0, %1, %cst {dimension_numbers = #tpu.dot_dimension_numbers<[1], [0], [0], [1], [0, 0, 1, 1], [], []>} : vector<8x2048xbf16>, vector<2048x128xbf16>, vector<8x128xf32> -> vector<8x128xf32>
    %c0_3 = arith.constant 0 : index
    %c0_4 = arith.constant 0 : index
    %3 = vector.load %arg3[%c0_3, %c0_4] : memref<1x128xf32, #tpu.memory_space<vmem>>, vector<1x128xf32>
    %4 = vector.broadcast %3 : vector<1x128xf32> to vector<8x128xf32>
    %5 = arith.addf %2, %4 : vector<8x128xf32>
    %cst_5 = arith.constant 0.000000e+00 : f32
    %6 = vector.broadcast %cst_5 : f32 to vector<8x128xf32>
    %7 = arith.maximumf %5, %6 : vector<8x128xf32>
    %8 = arith.truncf %7 : vector<8x128xf32> to vector<8x128xbf16>
    %c0_6 = arith.constant 0 : index
    %c0_7 = arith.constant 0 : index
    %9 = vector.load %arg4[%c0_6, %c0_7] : memref<128x128xbf16, #tpu.memory_space<vmem>>, vector<128x128xbf16>
    %cst_8 = arith.constant dense<0.000000e+00> : vector<8x128xf32>
    %10 = tpu.matmul %8, %9, %cst_8 {dimension_numbers = #tpu.dot_dimension_numbers<[1], [0], [0], [1], [0, 0, 1, 1], [], []>} : vector<8x128xbf16>, vector<128x128xbf16>, vector<8x128xf32> -> vector<8x128xf32>
    %c0_9 = arith.constant 0 : index
    %c0_10 = arith.constant 0 : index
    %11 = vector.load %arg5[%c0_9, %c0_10] : memref<1x128xf32, #tpu.memory_space<vmem>>, vector<1x128xf32>
    %12 = vector.broadcast %11 : vector<1x128xf32> to vector<8x128xf32>
    %13 = arith.addf %10, %12 : vector<8x128xf32>
    %cst_11 = arith.constant 0.000000e+00 : f32
    %14 = vector.broadcast %cst_11 : f32 to vector<8x128xf32>
    %15 = arith.maximumf %13, %14 : vector<8x128xf32>
    %16 = arith.truncf %15 : vector<8x128xf32> to vector<8x128xbf16>
    %c0_12 = arith.constant 0 : index
    %c0_13 = arith.constant 0 : index
    %17 = vector.load %arg6[%c0_12, %c0_13] : memref<128x128xbf16, #tpu.memory_space<vmem>>, vector<128x128xbf16>
    %cst_14 = arith.constant dense<0.000000e+00> : vector<8x128xf32>
    %18 = tpu.matmul %16, %17, %cst_14 {dimension_numbers = #tpu.dot_dimension_numbers<[1], [0], [0], [1], [0, 0, 1, 1], [], []>} : vector<8x128xbf16>, vector<128x128xbf16>, vector<8x128xf32> -> vector<8x128xf32>
    %c0_15 = arith.constant 0 : index
    %c0_16 = arith.constant 0 : index
    %19 = vector.load %arg7[%c0_15, %c0_16] : memref<1x128xf32, #tpu.memory_space<vmem>>, vector<1x128xf32>
    %20 = vector.broadcast %19 : vector<1x128xf32> to vector<8x128xf32>
    %21 = arith.addf %18, %20 : vector<8x128xf32>
    %c0_17 = arith.constant 0 : index
    %c0_18 = arith.constant 0 : index
    %22 = vector.load %arg8[%c0_17, %c0_18] : memref<8x128xf32, #tpu.memory_space<vmem>>, vector<8x128xf32>
    tpu.vector_store %arg8[%c0_17, %c0_18], %21 {strides = array<i32>} : memref<8x128xf32, #tpu.memory_space<vmem>>, vector<8x128xf32>,
    return
  }
  func.func @transform_0(%arg0: i32) -> (i32, i32) {
    %c0_i32 = arith.constant 0 : i32
    %c0_i32_0 = arith.constant 0 : i32
    return %arg0, %c0_i32 : i32, i32
  }
  func.func @transform_1(%arg0: i32) -> (i32, i32) {
    %c0_i32 = arith.constant 0 : i32
    %c0_i32_0 = arith.constant 0 : i32
    %c0_i32_1 = arith.constant 0 : i32
    return %c0_i32, %c0_i32_0 : i32, i32
  }
  func.func @transform_2(%arg0: i32) -> (i32, i32) {
    %c0_i32 = arith.constant 0 : i32
    %c0_i32_0 = arith.constant 0 : i32
    %c0_i32_1 = arith.constant 0 : i32
    return %c0_i32, %c0_i32_0 : i32, i32
  }
  func.func @transform_3(%arg0: i32) -> (i32, i32) {
    %c0_i32 = arith.constant 0 : i32
    %c0_i32_0 = arith.constant 0 : i32
    %c0_i32_1 = arith.constant 0 : i32
    return %c0_i32, %c0_i32_0 : i32, i32
  }
  func.func @transform_4(%arg0: i32) -> (i32, i32) {
    %c0_i32 = arith.constant 0 : i32
    %c0_i32_0 = arith.constant 0 : i32
    %c0_i32_1 = arith.constant 0 : i32
    return %c0_i32, %c0_i32_0 : i32, i32
  }
  func.func @transform_5(%arg0: i32) -> (i32, i32) {
    %c0_i32 = arith.constant 0 : i32
    %c0_i32_0 = arith.constant 0 : i32
    %c0_i32_1 = arith.constant 0 : i32
    return %c0_i32, %c0_i32_0 : i32, i32
  }
  func.func @transform_6(%arg0: i32) -> (i32, i32) {
    %c0_i32 = arith.constant 0 : i32
    %c0_i32_0 = arith.constant 0 : i32
    %c0_i32_1 = arith.constant 0 : i32
    return %c0_i32, %c0_i32_0 : i32, i32
  }
  func.func @transform_7(%arg0: i32) -> (i32, i32) {
    %c0_i32 = arith.constant 0 : i32
    %c0_i32_0 = arith.constant 0 : i32
    return %arg0, %c0_i32 : i32, i32
  }
}

</mosaic_0001>

<llo_original>
// kernel: lenet5_forward.3
$region0: #{lenet5_forward.3}
  #allocation0 [shape = 'u32[]', space=smem, size = 0x4, offset = 0x4, fixed_abs, tag = 'smem constant byte address 0x4 - core index']
  #allocation1 [shape = 'u32[144,128]{1,0:T(1,128)}', space=vmem, size = 0x12000, scoped, tag = 'internal scratch']
  %s0 = inlined_call_operand.vmem [shape: bf16[288,40], index: 0, kind: input, shape index: {}]
  %s1 = inlined_call_operand.vmem [shape: bf16[40,512], index: 1, kind: input, shape index: {}]
  %s2 = inlined_call_operand.vmem [shape: f32[1,128], index: 2, kind: input, shape index: {}]
  %s3 = inlined_call_operand.vmem [shape: bf16[288,128], index: 3, kind: output, shape index: {}]
  %s4 = sld [smem:[#allocation0]]
  $region22: #{lenet5_forward.3} parent=0
    _
  %s6 = ssub.s32 1, %s4
  %s7 = scalar_select 0, %s6, %s4
  // Predicated region
  $region2: #{lenet5_forward.3} parent=0 // pred_check
    _
  $region3: #{lenet5_forward.3} parent=0 // pred_check_branch
    %9 = sbr.rel (0) target = $region5
  $region4: #{lenet5_forward.3} parent=0 // pred_region
    _
  $region5: #{lenet5_forward.3} parent=0 // pred_fallthru
    _
  // Predicated region
  $region6: #{lenet5_forward.3} parent=0 // pred_check
    _
  $region7: #{lenet5_forward.3} parent=0 // pred_check_branch
    %11 = sbr.rel (0) target = $region9
  $region8: #{lenet5_forward.3} parent=0 // pred_region
    _
  $region9: #{lenet5_forward.3} parent=0 // pred_fallthru
    _
  // Predicated region
  $region10: #{lenet5_forward.3} parent=0 // pred_check
    _
  $region11: #{lenet5_forward.3} parent=0 // pred_check_branch
    %13 = sbr.rel (0) target = $region13
  $region12: #{lenet5_forward.3} parent=0 // pred_region
    _
  $region13: #{lenet5_forward.3} parent=0 // pred_fallthru
    _
  %v15 = vld [vmem:[%s0] sm:$0xf]
  %v16 = vld [vmem:[%s0 + $0x4] sm:$0xf]
  %v17 = vld [vmem:[%s0 + $0x8] sm:$0xf]
  %v18 = vld [vmem:[%s0 + $0xc] sm:$0xf]
  %v19 = vld [vmem:[%s0 + $0x10] sm:$0xf]
  %v20 = vld [vmem:[%s0 + $0x14] sm:$0xf]
  %v21 = vld [vmem:[%s0 + $0x18] sm:$0xf]
  %v22 = vld [vmem:[%s0 + $0x1c] sm:$0xf]
  %v23 = vld [vmem:[%s0 + $0x20] sm:$0xf]
  %v24 = vld [vmem:[%s0 + $0x24] sm:$0xf]
  %v25 = vld [vmem:[%s0 + $0x28] sm:$0xf]
  %v26 = vld [vmem:[%s0 + $0x2c] sm:$0xf]
  %v27 = vld [vmem:[%s0 + $0x30] sm:$0xf]
  %v28 = vld [vmem:[%s0 + $0x34] sm:$0xf]
  %v29 = vld [vmem:[%s0 + $0x38] sm:$0xf]
  %v30 = vld [vmem:[%s0 + $0x3c] sm:$0xf]
  %v31 = vld [vmem:[%s0 + $0x40] sm:$0xf]
  %v32 = vld [vmem:[%s0 + $0x44] sm:$0xf]
  %v33 = vld [vmem:[%s0 + $0x48] sm:$0xf]
  %v34 = vld [vmem:[%s0 + $0x4c] sm:$0xf]
  %v35 = vld [vmem:[%s0 + $0x50] sm:$0xf]
  %v36 = vld [vmem:[%s0 + $0x54] sm:$0xf]
  %v37 = vld [vmem:[%s0 + $0x58] sm:$0xf]
  %v38 = vld [vmem:[%s0 + $0x5c] sm:$0xf]
  %v39 = vld [vmem:[%s0 + $0x60] sm:$0xf]
  %v40 = vld [vmem:[%s0 + $0x64] sm:$0xf]
  %v41 = vld [vmem:[%s0 + $0x68] sm:$0xf]
  %v42 = vld [vmem:[%s0 + $0x6c] sm:$0xf]
  %v43 = vld [vmem:[%s0 + $0x70] sm:$0xf]
  %v44 = vld [vmem:[%s0 + $0x74] sm:$0xf]
  %v45 = vld [vmem:[%s0 + $0x78] sm:$0xf]
  %v46 = vld [vmem:[%s0 + $0x7c] sm:$0xf]
  %v47 = vld [vmem:[%s0 + $0x80] sm:$0xf]
  %v48 = vld [vmem:[%s0 + $0x84] sm:$0xf]
  %v49 = vld [vmem:[%s0 + $0x88] sm:$0xf]
  %v50 = vld [vmem:[%s0 + $0x8c] sm:$0xf]
  %v51 = vld [vmem:[%s1] sm:$0xff]
  %v52 = vld [vmem:[%s1 + $0x8] sm:$0xff]
  %v53 = vld [vmem:[%s1 + $0x10] sm:$0xff]
  %v54 = vld [vmem:[%s1 + $0x18] sm:$0xff]
  %v55 = vld [vmem:[%s1 + $0x20] sm:$0xff]
  %v56 = vld [vmem:[%s1 + $0x28] sm:$0xff]
  %v57 = vld [vmem:[%s1 + $0x30] sm:$0xff]
  %v58 = vld [vmem:[%s1 + $0x38] sm:$0xff]
  %v59 = vld [vmem:[%s1 + $0x40] sm:$0xff]
  %v60 = vld [vmem:[%s1 + $0x48] sm:$0xff]
  %v97 = vunpack.c.l.b16 %v15
  %v98 = vunpack.c.l.b16 %v16
  %v99 = vunpack.c.l.b16 %v17
  %v100 = vunpack.c.l.b16 %v18
  %v101 = vunpack.c.l.b16 %v19
  %v102 = vunpack.c.l.b16 %v20
  %v103 = vunpack.c.l.b16 %v21
  %v104 = vunpack.c.l.b16 %v22
  %v105 = vunpack.c.l.b16 %v23
  %v106 = vunpack.c.l.b16 %v24
  %v107 = vunpack.c.l.b16 %v25
  %v108 = vunpack.c.l.b16 %v26
  %v109 = vunpack.c.l.b16 %v27
  %v110 = vunpack.c.l.b16 %v28
  %v111 = vunpack.c.l.b16 %v29
  %v112 = vunpack.c.l.b16 %v30
  %v113 = vunpack.c.l.b16 %v31
  %v114 = vunpack.c.l.b16 %v32
  %v115 = vunpack.c.l.b16 %v33
  %v116 = vunpack.c.l.b16 %v34
  %v117 = vunpack.c.l.b16 %v35
  %v118 = vunpack.c.l.b16 %v36
  %v119 = vunpack.c.l.b16 %v37
  %v120 = vunpack.c.l.b16 %v38
  %v121 = vunpack.c.l.b16 %v39
  %v122 = vunpack.c.l.b16 %v40
  %v123 = vunpack.c.l.b16 %v41
  %v124 = vunpack.c.l.b16 %v42
  %v125 = vunpack.c.l.b16 %v43
  %v126 = vunpack.c.l.b16 %v44
  %v127 = vunpack.c.l.b16 %v45
  %v128 = vunpack.c.l.b16 %v46
  %v129 = vunpack.c.l.b16 %v47
  %v130 = vunpack.c.l.b16 %v48
  %v131 = vunpack.c.l.b16 %v49
  %v132 = vunpack.c.l.b16 %v50
  %v133 = vpack.c.b16 %v98, %v97
  %v134 = vpack.c.b16 %v100, %v99
  %v135 = vpack.c.b16 %v102, %v101
  %v136 = vpack.c.b16 %v104, %v103
  %v137 = vpack.c.b16 %v106, %v105
  %v138 = vpack.c.b16 %v108, %v107
  %v139 = vpack.c.b16 %v110, %v109
  %v140 = vpack.c.b16 %v112, %v111
  %v141 = vpack.c.b16 %v114, %v113
  %v142 = vpack.c.b16 %v116, %v115
  %v143 = vpack.c.b16 %v118, %v117
  %v144 = vpack.c.b16 %v120, %v119
  %v145 = vpack.c.b16 %v122, %v121
  %v146 = vpack.c.b16 %v124, %v123
  %v147 = vpack.c.b16 %v126, %v125
  %v148 = vpack.c.b16 %v128, %v127
  %v149 = vpack.c.b16 %v130, %v129
  %v150 = vpack.c.b16 %v132, %v131
  %v161 = vunpack.c.l.b16 %v51
  %v162 = vunpack.c.h.b16 %v51
  %v163 = vunpack.c.l.b16 %v52
  %v164 = vunpack.c.h.b16 %v52
  %v165 = vunpack.c.l.b16 %v53
  %v166 = vunpack.c.h.b16 %v53
  %v167 = vunpack.c.l.b16 %v54
  %v168 = vunpack.c.h.b16 %v54
  %v169 = vunpack.c.l.b16 %v55
  %v170 = vunpack.c.h.b16 %v55
  %v171 = vunpack.c.l.b16 %v56
  %v172 = vunpack.c.h.b16 %v56
  %v173 = vunpack.c.l.b16 %v57
  %v174 = vunpack.c.h.b16 %v57
  %v175 = vunpack.c.l.b16 %v58
  %v176 = vunpack.c.h.b16 %v58
  %v177 = vunpack.c.l.b16 %v59
  %v178 = vunpack.c.h.b16 %v59
  %v179 = vunpack.c.l.b16 %v60
  %v180 = vunpack.c.h.b16 %v60
  %v181 = vpack.c.b16 %v165, %v161
  %v182 = vpack.c.b16 %v166, %v162
  %v183 = vpack.c.b16 %v167, %v163
  %v184 = vpack.c.b16 %v168, %v164
  %v185 = vpack.c.b16 %v173, %v169
  %v186 = vpack.c.b16 %v174, %v170
  %v187 = vpack.c.b16 %v175, %v171
  %v188 = vpack.c.b16 %v176, %v172
  %v189 = vpack.c.b16 %v177, %v177
  %v190 = vpack.c.b16 %v178, %v178
  %v191 = vpack.c.b16 %v179, %v179
  %v192 = vpack.c.b16 %v180, %v180
  %vm201 = vcmask 326656
  %v203 = vsel %vm201, %v133, 0
  %v206 = vsel %vm201, %v134, 0
  %v209 = vsel %vm201, %v135, 0
  %v212 = vsel %vm201, %v136, 0
  %v215 = vsel %vm201, %v137, 0
  %v218 = vsel %vm201, %v138, 0
  %v221 = vsel %vm201, %v139, 0
  %v224 = vsel %vm201, %v140, 0
  %v227 = vsel %vm201, %v141, 0
  %v230 = vsel %vm201, %v142, 0
  %v233 = vsel %vm201, %v143, 0
  %v236 = vsel %vm201, %v144, 0
  %v239 = vsel %vm201, %v145, 0
  %v242 = vsel %vm201, %v146, 0
  %v245 = vsel %vm201, %v147, 0
  %v248 = vsel %vm201, %v148, 0
  %v251 = vsel %vm201, %v149, 0
  %v254 = vsel %vm201, %v150, 0
  %vm256 = vcmask 1043456
  %v258 = vsel %vm256, %v189, 0
  %v261 = vsel %vm256, %v190, 0
  %v264 = vsel %vm256, %v191, 0
  %v267 = vsel %vm256, %v192, 0
  %269 = vmatprep.subr.bf16.mxu0 %v182
  %270 = vmatpush1.bf16.msra.mxu0 %v181
  %271 = vmatprep.subr.bf16.mxu0 %v186
  %272 = vmatpush1.bf16.msra.mxu0 %v185
  %273 = vmatprep.subr.bf16.mxu0 %v261
  %274 = vmatpush1.bf16.msra.mxu0 %v258
  %275 = vmatprep.subr.bf16.mxu0 0
  %276 = vmatpush1.bf16.msra.mxu0 0
  %277 = vmatprep.subr.bf16.mxu0 0
  %278 = vmatpush1.bf16.msra.mxu0 0
  %279 = vmatprep.subr.bf16.mxu0 0
  %280 = vmatpush1.bf16.msra.mxu0 0
  %281 = vmatprep.subr.bf16.mxu0 0
  %282 = vmatpush1.bf16.msra.mxu0 0
  %283 = vmatprep.subr.bf16.mxu0 0
  %284 = vmatpush1.bf16.msra.mxu0 0
  %285 = vmatprep.subr.bf16.mxu0 0
  %286 = vmatpush1.bf16.msra.mxu0 0
  %287 = vmatprep.subr.bf16.mxu0 0
  %288 = vmatpush1.bf16.msra.mxu0 0
  %289 = vmatprep.subr.bf16.mxu0 0
  %290 = vmatpush1.bf16.msra.mxu0 0
  %291 = vmatprep.subr.bf16.mxu0 0
  %292 = vmatpush1.bf16.msra.mxu0 0
  %293 = vmatprep.subr.bf16.mxu0 0
  %294 = vmatpush1.bf16.msra.mxu0 0
  %295 = vmatprep.subr.bf16.mxu0 0
  %296 = vmatpush1.bf16.msra.mxu0 0
  %297 = vmatprep.subr.bf16.mxu0 0
  %298 = vmatpush1.bf16.msra.mxu0 0
  %299 = vmatprep.subr.bf16.mxu0 0
  %300 = vmatpush1.bf16.msra.mxu0 0
  %301 = vmatprep.mubr.bf16.mxu0 0
  %302 = vmatmul.mubr.bf16.gmra.mrb[0].mxu0 %v203
  %v303 = vpop.f32.mrb[0].mxu0
  %v304 = vadd.f32 0.0, %v303
  %v305 = vpop.f32.mrb[0].mxu0
  %v306 = vadd.f32 0.0, %v305
  %v307 = vpop.f32.mrb[0].mxu0
  %v308 = vadd.f32 0.0, %v307
  %v309 = vpop.f32.mrb[0].mxu0
  %v310 = vadd.f32 0.0, %v309
  %311 = vmatprep.mubr.bf16.mxu0 0
  %312 = vmatmul.mubr.bf16.gmra.mrb[0].mxu0 %v206
  %v313 = vpop.f32.mrb[0].mxu0
  %v314 = vadd.f32 0.0, %v313
  %v315 = vpop.f32.mrb[0].mxu0
  %v316 = vadd.f32 0.0, %v315
  %v317 = vpop.f32.mrb[0].mxu0
  %v318 = vadd.f32 0.0, %v317
  %v319 = vpop.f32.mrb[0].mxu0
  %v320 = vadd.f32 0.0, %v319
  %321 = vmatprep.mubr.bf16.mxu0 0
  %322 = vmatmul.mubr.bf16.gmra.mrb[0].mxu0 %v209
  %v323 = vpop.f32.mrb[0].mxu0
  %v324 = vadd.f32 0.0, %v323
  %v325 = vpop.f32.mrb[0].mxu0
  %v326 = vadd.f32 0.0, %v325
  %v327 = vpop.f32.mrb[0].mxu0
  %v328 = vadd.f32 0.0, %v327
  %v329 = vpop.f32.mrb[0].mxu0
  %v330 = vadd.f32 0.0, %v329
  %331 = vmatprep.mubr.bf16.mxu0 0
  %332 = vmatmul.mubr.bf16.gmra.mrb[0].mxu0 %v212
  %v333 = vpop.f32.mrb[0].mxu0
  %v334 = vadd.f32 0.0, %v333
  %v335 = vpop.f32.mrb[0].mxu0
  %v336 = vadd.f32 0.0, %v335
  %v337 = vpop.f32.mrb[0].mxu0
  %v338 = vadd.f32 0.0, %v337
  %v339 = vpop.f32.mrb[0].mxu0
  %v340 = vadd.f32 0.0, %v339
  %341 = vmatprep.mubr.bf16.mxu0 0
  %342 = vmatmul.mubr.bf16.gmra.mrb[0].mxu0 %v215
  %v343 = vpop.f32.mrb[0].mxu0
  %v344 = vadd.f32 0.0, %v343
  %v345 = vpop.f32.mrb[0].mxu0
  %v346 = vadd.f32 0.0, %v345
  %v347 = vpop.f32.mrb[0].mxu0
  %v348 = vadd.f32 0.0, %v347
  %v349 = vpop.f32.mrb[0].mxu0
  %v350 = vadd.f32 0.0, %v349
  %351 = vmatprep.mubr.bf16.mxu0 0
  %352 = vmatmul.mubr.bf16.gmra.mrb[0].mxu0 %v218
  %v353 = vpop.f32.mrb[0].mxu0
  %v354 = vadd.f32 0.0, %v353
  %v355 = vpop.f32.mrb[0].mxu0
  %v356 = vadd.f32 0.0, %v355
  %v357 = vpop.f32.mrb[0].mxu0
  %v358 = vadd.f32 0.0, %v357
  %v359 = vpop.f32.mrb[0].mxu0
  %v360 = vadd.f32 0.0, %v359
  %361 = vmatprep.mubr.bf16.mxu0 0
  %362 = vmatmul.mubr.bf16.gmra.mrb[0].mxu0 %v221
  %v363 = vpop.f32.mrb[0].mxu0
  %v364 = vadd.f32 0.0, %v363
  %v365 = vpop.f32.mrb[0].mxu0
  %v366 = vadd.f32 0.0, %v365
  %v367 = vpop.f32.mrb[0].mxu0
  %v368 = vadd.f32 0.0, %v367
  %v369 = vpop.f32.mrb[0].mxu0
  %v370 = vadd.f32 0.0, %v369
  %371 = vmatprep.mubr.bf16.mxu0 0
  %372 = vmatmul.mubr.bf16.gmra.mrb[0].mxu0 %v224
  %v373 = vpop.f32.mrb[0].mxu0
  %v374 = vadd.f32 0.0, %v373
  %v375 = vpop.f32.mrb[0].mxu0
  %v376 = vadd.f32 0.0, %v375
  %v377 = vpop.f32.mrb[0].mxu0
  %v378 = vadd.f32 0.0, %v377
  %v379 = vpop.f32.mrb[0].mxu0
  %v380 = vadd.f32 0.0, %v379
  %381 = vmatprep.mubr.bf16.mxu0 0
  %382 = vmatmul.mubr.bf16.gmra.mrb[0].mxu0 %v227
  %v383 = vpop.f32.mrb[0].mxu0
  %v384 = vadd.f32 0.0, %v383
  %v385 = vpop.f32.mrb[0].mxu0
  %v386 = vadd.f32 0.0, %v385
  %v387 = vpop.f32.mrb[0].mxu0
  %v388 = vadd.f32 0.0, %v387
  %v389 = vpop.f32.mrb[0].mxu0
  %v390 = vadd.f32 0.0, %v389
  %391 = vmatprep.mubr.bf16.mxu0 0
  %392 = vmatmul.mubr.bf16.gmra.mrb[0].mxu0 %v230
  %v393 = vpop.f32.mrb[0].mxu0
  %v394 = vadd.f32 0.0, %v393
  %v395 = vpop.f32.mrb[0].mxu0
  %v396 = vadd.f32 0.0, %v395
  %v397 = vpop.f32.mrb[0].mxu0
  %v398 = vadd.f32 0.0, %v397
  %v399 = vpop.f32.mrb[0].mxu0
  %v400 = vadd.f32 0.0, %v399
  %401 = vmatprep.mubr.bf16.mxu0 0
  %402 = vmatmul.mubr.bf16.gmra.mrb[0].mxu0 %v233
  %v403 = vpop.f32.mrb[0].mxu0
  %v404 = vadd.f32 0.0, %v403
  %v405 = vpop.f32.mrb[0].mxu0
  %v406 = vadd.f32 0.0, %v405
  %v407 = vpop.f32.mrb[0].mxu0
  %v408 = vadd.f32 0.0, %v407
  %v409 = vpop.f32.mrb[0].mxu0
  %v410 = vadd.f32 0.0, %v409
  %411 = vmatprep.mubr.bf16.mxu0 0
  %412 = vmatmul.mubr.bf16.gmra.mrb[0].mxu0 %v236
  %v413 = vpop.f32.mrb[0].mxu0
  %v414 = vadd.f32 0.0, %v413
  %v415 = vpop.f32.mrb[0].mxu0
  %v416 = vadd.f32 0.0, %v415
  %v417 = vpop.f32.mrb[0].mxu0
  %v418 = vadd.f32 0.0, %v417
  %v419 = vpop.f32.mrb[0].mxu0
  %v420 = vadd.f32 0.0, %v419
  %421 = vmatprep.mubr.bf16.mxu0 0
  %422 = vmatmul.mubr.bf16.gmra.mrb[0].mxu0 %v239
  %v423 = vpop.f32.mrb[0].mxu0
  %v424 = vadd.f32 0.0, %v423
  %v425 = vpop.f32.mrb[0].mxu0
  %v426 = vadd.f32 0.0, %v425
  %v427 = vpop.f32.mrb[0].mxu0
  %v428 = vadd.f32 0.0, %v427
  %v429 = vpop.f32.mrb[0].mxu0
  %v430 = vadd.f32 0.0, %v429
  %431 = vmatprep.mubr.bf16.mxu0 0
  %432 = vmatmul.mubr.bf16.gmra.mrb[0].mxu0 %v242
  %v433 = vpop.f32.mrb[0].mxu0
  %v434 = vadd.f32 0.0, %v433
  %v435 = vpop.f32.mrb[0].mxu0
  %v436 = vadd.f32 0.0, %v435
  %v437 = vpop.f32.mrb[0].mxu0
  %v438 = vadd.f32 0.0, %v437
  %v439 = vpop.f32.mrb[0].mxu0
  %v440 = vadd.f32 0.0, %v439
  %441 = vmatprep.mubr.bf16.mxu0 0
  %442 = vmatmul.mubr.bf16.gmra.mrb[0].mxu0 %v245
  %v443 = vpop.f32.mrb[0].mxu0
  %v444 = vadd.f32 0.0, %v443
  %v445 = vpop.f32.mrb[0].mxu0
  %v446 = vadd.f32 0.0, %v445
  %v447 = vpop.f32.mrb[0].mxu0
  %v448 = vadd.f32 0.0, %v447
  %v449 = vpop.f32.mrb[0].mxu0
  %v450 = vadd.f32 0.0, %v449
  %451 = vmatprep.mubr.bf16.mxu0 0
  %452 = vmatmul.mubr.bf16.gmra.mrb[0].mxu0 %v248
  %v453 = vpop.f32.mrb[0].mxu0
  %v454 = vadd.f32 0.0, %v453
  %v455 = vpop.f32.mrb[0].mxu0
  %v456 = vadd.f32 0.0, %v455
  %v457 = vpop.f32.mrb[0].mxu0
  %v458 = vadd.f32 0.0, %v457
  %v459 = vpop.f32.mrb[0].mxu0
  %v460 = vadd.f32 0.0, %v459
  %461 = vmatprep.mubr.bf16.mxu0 0
  %462 = vmatmul.mubr.bf16.gmra.mrb[0].mxu0 %v251
  %v463 = vpop.f32.mrb[0].mxu0
  %v464 = vadd.f32 0.0, %v463
  %v465 = vpop.f32.mrb[0].mxu0
  %v466 = vadd.f32 0.0, %v465
  %v467 = vpop.f32.mrb[0].mxu0
  %v468 = vadd.f32 0.0, %v467
  %v469 = vpop.f32.mrb[0].mxu0
  %v470 = vadd.f32 0.0, %v469
  %471 = vmatprep.mubr.bf16.mxu0 0
  %472 = vmatmul.mubr.bf16.gmra.mrb[0].mxu0 %v254
  %v473 = vpop.f32.mrb[0].mxu0
  %v474 = vadd.f32 0.0, %v473
  %v475 = vpop.f32.mrb[0].mxu0
  %v476 = vadd.f32 0.0, %v475
  %v477 = vpop.f32.mrb[0].mxu0
  %v478 = vadd.f32 0.0, %v477
  %v479 = vpop.f32.mrb[0].mxu0
  %v480 = vadd.f32 0.0, %v479
  %481 = vdwg.mxu0
  %482 = vmatprep.subr.bf16.mxu0 %v184
  %483 = vmatpush1.bf16.msra.mxu0 %v183
  %484 = vmatprep.subr.bf16.mxu0 %v188
  %485 = vmatpush1.bf16.msra.mxu0 %v187
  %486 = vmatprep.subr.bf16.mxu0 %v267
  %487 = vmatpush1.bf16.msra.mxu0 %v264
  %488 = vmatprep.subr.bf16.mxu0 0
  %489 = vmatpush1.bf16.msra.mxu0 0
  %490 = vmatprep.subr.bf16.mxu0 0
  %491 = vmatpush1.bf16.msra.mxu0 0
  %492 = vmatprep.subr.bf16.mxu0 0
  %493 = vmatpush1.bf16.msra.mxu0 0
  %494 = vmatprep.subr.bf16.mxu0 0
  %495 = vmatpush1.bf16.msra.mxu0 0
  %496 = vmatprep.subr.bf16.mxu0 0
  %497 = vmatpush1.bf16.msra.mxu0 0
  %498 = vmatprep.subr.bf16.mxu0 0
  %499 = vmatpush1.bf16.msra.mxu0 0
  %500 = vmatprep.subr.bf16.mxu0 0
  %501 = vmatpush1.bf16.msra.mxu0 0
  %502 = vmatprep.subr.bf16.mxu0 0
  %503 = vmatpush1.bf16.msra.mxu0 0
  %504 = vmatprep.subr.bf16.mxu0 0
  %505 = vmatpush1.bf16.msra.mxu0 0
  %506 = vmatprep.subr.bf16.mxu0 0
  %507 = vmatpush1.bf16.msra.mxu0 0
  %508 = vmatprep.subr.bf16.mxu0 0
  %509 = vmatpush1.bf16.msra.mxu0 0
  %510 = vmatprep.subr.bf16.mxu0 0
  %511 = vmatpush1.bf16.msra.mxu0 0
  %512 = vmatprep.subr.bf16.mxu0 0
  %513 = vmatpush1.bf16.msra.mxu0 0
  %514 = vmatprep.mubr.bf16.mxu0 0
  %515 = vmatmul.mubr.bf16.gmra.mrb[0].mxu0 %v203
  %v516 = vpop.f32.mrb[0].mxu0
  %v517 = vadd.f32 0.0, %v516
  %v518 = vpop.f32.mrb[0].mxu0
  %v519 = vadd.f32 0.0, %v518
  %v520 = vpop.f32.mrb[0].mxu0
  %v521 = vadd.f32 0.0, %v520
  %v522 = vpop.f32.mrb[0].mxu0
  %v523 = vadd.f32 0.0, %v522
  %524 = vmatprep.mubr.bf16.mxu0 0
  %525 = vmatmul.mubr.bf16.gmra.mrb[0].mxu0 %v206
  %v526 = vpop.f32.mrb[0].mxu0
  %v527 = vadd.f32 0.0, %v526
  %v528 = vpop.f32.mrb[0].mxu0
  %v529 = vadd.f32 0.0, %v528
  %v530 = vpop.f32.mrb[0].mxu0
  %v531 = vadd.f32 0.0, %v530
  %v532 = vpop.f32.mrb[0].mxu0
  %v533 = vadd.f32 0.0, %v532
  %534 = vmatprep.mubr.bf16.mxu0 0
  %535 = vmatmul.mubr.bf16.gmra.mrb[0].mxu0 %v209
  %v536 = vpop.f32.mrb[0].mxu0
  %v537 = vadd.f32 0.0, %v536
  %v538 = vpop.f32.mrb[0].mxu0
  %v539 = vadd.f32 0.0, %v538
  %v540 = vpop.f32.mrb[0].mxu0
  %v541 = vadd.f32 0.0, %v540
  %v542 = vpop.f32.mrb[0].mxu0
  %v543 = vadd.f32 0.0, %v542
  %544 = vmatprep.mubr.bf16.mxu0 0
  %545 = vmatmul.mubr.bf16.gmra.mrb[0].mxu0 %v212
  %v546 = vpop.f32.mrb[0].mxu0
  %v547 = vadd.f32 0.0, %v546
  %v548 = vpop.f32.mrb[0].mxu0
  %v549 = vadd.f32 0.0, %v548
  %v550 = vpop.f32.mrb[0].mxu0
  %v551 = vadd.f32 0.0, %v550
  %v552 = vpop.f32.mrb[0].mxu0
  %v553 = vadd.f32 0.0, %v552
  %554 = vmatprep.mubr.bf16.mxu0 0
  %555 = vmatmul.mubr.bf16.gmra.mrb[0].mxu0 %v215
  %v556 = vpop.f32.mrb[0].mxu0
  %v557 = vadd.f32 0.0, %v556
  %v558 = vpop.f32.mrb[0].mxu0
  %v559 = vadd.f32 0.0, %v558
  %v560 = vpop.f32.mrb[0].mxu0
  %v561 = vadd.f32 0.0, %v560
  %v562 = vpop.f32.mrb[0].mxu0
  %v563 = vadd.f32 0.0, %v562
  %564 = vmatprep.mubr.bf16.mxu0 0
  %565 = vmatmul.mubr.bf16.gmra.mrb[0].mxu0 %v218
  %v566 = vpop.f32.mrb[0].mxu0
  %v567 = vadd.f32 0.0, %v566
  %v568 = vpop.f32.mrb[0].mxu0
  %v569 = vadd.f32 0.0, %v568
  %v570 = vpop.f32.mrb[0].mxu0
  %v571 = vadd.f32 0.0, %v570
  %v572 = vpop.f32.mrb[0].mxu0
  %v573 = vadd.f32 0.0, %v572
  %574 = vmatprep.mubr.bf16.mxu0 0
  %575 = vmatmul.mubr.bf16.gmra.mrb[0].mxu0 %v221
  %v576 = vpop.f32.mrb[0].mxu0
  %v577 = vadd.f32 0.0, %v576
  %v578 = vpop.f32.mrb[0].mxu0
  %v579 = vadd.f32 0.0, %v578
  %v580 = vpop.f32.mrb[0].mxu0
  %v581 = vadd.f32 0.0, %v580
  %v582 = vpop.f32.mrb[0].mxu0
  %v583 = vadd.f32 0.0, %v582
  %584 = vmatprep.mubr.bf16.mxu0 0
  %585 = vmatmul.mubr.bf16.gmra.mrb[0].mxu0 %v224
  %v586 = vpop.f32.mrb[0].mxu0
  %v587 = vadd.f32 0.0, %v586
  %v588 = vpop.f32.mrb[0].mxu0
  %v589 = vadd.f32 0.0, %v588
  %v590 = vpop.f32.mrb[0].mxu0
  %v591 = vadd.f32 0.0, %v590
  %v592 = vpop.f32.mrb[0].mxu0
  %v593 = vadd.f32 0.0, %v592
  %594 = vmatprep.mubr.bf16.mxu0 0
  %595 = vmatmul.mubr.bf16.gmra.mrb[0].mxu0 %v227
  %v596 = vpop.f32.mrb[0].mxu0
  %v597 = vadd.f32 0.0, %v596
  %v598 = vpop.f32.mrb[0].mxu0
  %v599 = vadd.f32 0.0, %v598
  %v600 = vpop.f32.mrb[0].mxu0
  %v601 = vadd.f32 0.0, %v600
  %v602 = vpop.f32.mrb[0].mxu0
  %v603 = vadd.f32 0.0, %v602
  %604 = vmatprep.mubr.bf16.mxu0 0
  %605 = vmatmul.mubr.bf16.gmra.mrb[0].mxu0 %v230
  %v606 = vpop.f32.mrb[0].mxu0
  %v607 = vadd.f32 0.0, %v606
  %v608 = vpop.f32.mrb[0].mxu0
  %v609 = vadd.f32 0.0, %v608
  %v610 = vpop.f32.mrb[0].mxu0
  %v611 = vadd.f32 0.0, %v610
  %v612 = vpop.f32.mrb[0].mxu0
  %v613 = vadd.f32 0.0, %v612
  %614 = vmatprep.mubr.bf16.mxu0 0
  %615 = vmatmul.mubr.bf16.gmra.mrb[0].mxu0 %v233
  %v616 = vpop.f32.mrb[0].mxu0
  %v617 = vadd.f32 0.0, %v616
  %v618 = vpop.f32.mrb[0].mxu0
  %v619 = vadd.f32 0.0, %v618
  %v620 = vpop.f32.mrb[0].mxu0
  %v621 = vadd.f32 0.0, %v620
  %v622 = vpop.f32.mrb[0].mxu0
  %v623 = vadd.f32 0.0, %v622
  %624 = vmatprep.mubr.bf16.mxu0 0
  %625 = vmatmul.mubr.bf16.gmra.mrb[0].mxu0 %v236
  %v626 = vpop.f32.mrb[0].mxu0
  %v627 = vadd.f32 0.0, %v626
  %v628 = vpop.f32.mrb[0].mxu0
  %v629 = vadd.f32 0.0, %v628
  %v630 = vpop.f32.mrb[0].mxu0
  %v631 = vadd.f32 0.0, %v630
  %v632 = vpop.f32.mrb[0].mxu0
  %v633 = vadd.f32 0.0, %v632
  %634 = vmatprep.mubr.bf16.mxu0 0
  %635 = vmatmul.mubr.bf16.gmra.mrb[0].mxu0 %v239
  %v636 = vpop.f32.mrb[0].mxu0
  %v637 = vadd.f32 0.0, %v636
  %v638 = vpop.f32.mrb[0].mxu0
  %v639 = vadd.f32 0.0, %v638
  %v640 = vpop.f32.mrb[0].mxu0
  %v641 = vadd.f32 0.0, %v640
  %v642 = vpop.f32.mrb[0].mxu0
  %v643 = vadd.f32 0.0, %v642
  %644 = vmatprep.mubr.bf16.mxu0 0
  %645 = vmatmul.mubr.bf16.gmra.mrb[0].mxu0 %v242
  %v646 = vpop.f32.mrb[0].mxu0
  %v647 = vadd.f32 0.0, %v646
  %v648 = vpop.f32.mrb[0].mxu0
  %v649 = vadd.f32 0.0, %v648
  %v650 = vpop.f32.mrb[0].mxu0
  %v651 = vadd.f32 0.0, %v650
  %v652 = vpop.f32.mrb[0].mxu0
  %v653 = vadd.f32 0.0, %v652
  %654 = vmatprep.mubr.bf16.mxu0 0
  %655 = vmatmul.mubr.bf16.gmra.mrb[0].mxu0 %v245
  %v656 = vpop.f32.mrb[0].mxu0
  %v657 = vadd.f32 0.0, %v656
  %v658 = vpop.f32.mrb[0].mxu0
  %v659 = vadd.f32 0.0, %v658
  %v660 = vpop.f32.mrb[0].mxu0
  %v661 = vadd.f32 0.0, %v660
  %v662 = vpop.f32.mrb[0].mxu0
  %v663 = vadd.f32 0.0, %v662
  %664 = vmatprep.mubr.bf16.mxu0 0
  %665 = vmatmul.mubr.bf16.gmra.mrb[0].mxu0 %v248
  %v666 = vpop.f32.mrb[0].mxu0
  %v667 = vadd.f32 0.0, %v666
  %v668 = vpop.f32.mrb[0].mxu0
  %v669 = vadd.f32 0.0, %v668
  %v670 = vpop.f32.mrb[0].mxu0
  %v671 = vadd.f32 0.0, %v670
  %v672 = vpop.f32.mrb[0].mxu0
  %v673 = vadd.f32 0.0, %v672
  %674 = vmatprep.mubr.bf16.mxu0 0
  %675 = vmatmul.mubr.bf16.gmra.mrb[0].mxu0 %v251
  %v676 = vpop.f32.mrb[0].mxu0
  %v677 = vadd.f32 0.0, %v676
  %v678 = vpop.f32.mrb[0].mxu0
  %v679 = vadd.f32 0.0, %v678
  %v680 = vpop.f32.mrb[0].mxu0
  %v681 = vadd.f32 0.0, %v680
  %v682 = vpop.f32.mrb[0].mxu0
  %v683 = vadd.f32 0.0, %v682
  %684 = vmatprep.mubr.bf16.mxu0 0
  %685 = vmatmul.mubr.bf16.gmra.mrb[0].mxu0 %v254
  %v686 = vpop.f32.mrb[0].mxu0
  %v687 = vadd.f32 0.0, %v686
  %v688 = vpop.f32.mrb[0].mxu0
  %v689 = vadd.f32 0.0, %v688
  %v690 = vpop.f32.mrb[0].mxu0
  %v691 = vadd.f32 0.0, %v690
  %v692 = vpop.f32.mrb[0].mxu0
  %v693 = vadd.f32 0.0, %v692
  %694 = vdwg.mxu0
  %v695 = vmax.f32 %v304, %v306
  %v696 = vmax.f32 %v308, %v310
  %v697 = vmax.f32 %v314, %v316
  %v698 = vmax.f32 %v318, %v320
  %v699 = vmax.f32 %v324, %v326
  %v700 = vmax.f32 %v328, %v330
  %v701 = vmax.f32 %v334, %v336
  %v702 = vmax.f32 %v338, %v340
  %v703 = vmax.f32 %v344, %v346
  %v704 = vmax.f32 %v348, %v350
  %v705 = vmax.f32 %v354, %v356
  %v706 = vmax.f32 %v358, %v360
  %v707 = vmax.f32 %v364, %v366
  %v708 = vmax.f32 %v368, %v370
  %v709 = vmax.f32 %v374, %v376
  %v710 = vmax.f32 %v378, %v380
  %v711 = vmax.f32 %v384, %v386
  %v712 = vmax.f32 %v388, %v390
  %v713 = vmax.f32 %v394, %v396
  %v714 = vmax.f32 %v398, %v400
  %v715 = vmax.f32 %v404, %v406
  %v716 = vmax.f32 %v408, %v410
  %v717 = vmax.f32 %v414, %v416
  %v718 = vmax.f32 %v418, %v420
  %v719 = vmax.f32 %v424, %v426
  %v720 = vmax.f32 %v428, %v430
  %v721 = vmax.f32 %v434, %v436
  %v722 = vmax.f32 %v438, %v440
  %v723 = vmax.f32 %v444, %v446
  %v724 = vmax.f32 %v448, %v450
  %v725 = vmax.f32 %v454, %v456
  %v726 = vmax.f32 %v458, %v460
  %v727 = vmax.f32 %v464, %v466
  %v728 = vmax.f32 %v468, %v470
  %v729 = vmax.f32 %v474, %v476
  %v730 = vmax.f32 %v478, %v480
  %v731 = vmax.f32 %v517, %v519
  %v732 = vmax.f32 %v521, %v523
  %v733 = vmax.f32 %v527, %v529
  %v734 = vmax.f32 %v531, %v533
  %v735 = vmax.f32 %v537, %v539
  %v736 = vmax.f32 %v541, %v543
  %v737 = vmax.f32 %v547, %v549
  %v738 = vmax.f32 %v551, %v553
  %v739 = vmax.f32 %v557, %v559
  %v740 = vmax.f32 %v561, %v563
  %v741 = vmax.f32 %v567, %v569
  %v742 = vmax.f32 %v571, %v573
  %v743 = vmax.f32 %v577, %v579
  %v744 = vmax.f32 %v581, %v583
  %v745 = vmax.f32 %v587, %v589
  %v746 = vmax.f32 %v591, %v593
  %v747 = vmax.f32 %v597, %v599
  %v748 = vmax.f32 %v601, %v603
  %v749 = vmax.f32 %v607, %v609
  %v750 = vmax.f32 %v611, %v613
  %v751 = vmax.f32 %v617, %v619
  %v752 = vmax.f32 %v621, %v623
  %v753 = vmax.f32 %v627, %v629
  %v754 = vmax.f32 %v631, %v633
  %v755 = vmax.f32 %v637, %v639
  %v756 = vmax.f32 %v641, %v643
  %v757 = vmax.f32 %v647, %v649
  %v758 = vmax.f32 %v651, %v653
  %v759 = vmax.f32 %v657, %v659
  %v760 = vmax.f32 %v661, %v663
  %v761 = vmax.f32 %v667, %v669
  %v762 = vmax.f32 %v671, %v673
  %v763 = vmax.f32 %v677, %v679
  %v764 = vmax.f32 %v681, %v683
  %v765 = vmax.f32 %v687, %v689
  %v766 = vmax.f32 %v691, %v693
  %v767 = vmax.f32 %v695, %v731
  %v768 = vmax.f32 %v696, %v732
  %v769 = vmax.f32 %v697, %v733
  %v770 = vmax.f32 %v698, %v734
  %v771 = vmax.f32 %v699, %v735
  %v772 = vmax.f32 %v700, %v736
  %v773 = vmax.f32 %v701, %v737
  %v774 = vmax.f32 %v702, %v738
  %v775 = vmax.f32 %v703, %v739
  %v776 = vmax.f32 %v704, %v740
  %v777 = vmax.f32 %v705, %v741
  %v778 = vmax.f32 %v706, %v742
  %v779 = vmax.f32 %v707, %v743
  %v780 = vmax.f32 %v708, %v744
  %v781 = vmax.f32 %v709, %v745
  %v782 = vmax.f32 %v710, %v746
  %v783 = vmax.f32 %v711, %v747
  %v784 = vmax.f32 %v712, %v748
  %v785 = vmax.f32 %v713, %v749
  %v786 = vmax.f32 %v714, %v750
  %v787 = vmax.f32 %v715, %v751
  %v788 = vmax.f32 %v716, %v752
  %v789 = vmax.f32 %v717, %v753
  %v790 = vmax.f32 %v718, %v754
  %v791 = vmax.f32 %v719, %v755
  %v792 = vmax.f32 %v720, %v756
  %v793 = vmax.f32 %v721, %v757
  %v794 = vmax.f32 %v722, %v758
  %v795 = vmax.f32 %v723, %v759
  %v796 = vmax.f32 %v724, %v760
  %v797 = vmax.f32 %v725, %v761
  %v798 = vmax.f32 %v726, %v762
  %v799 = vmax.f32 %v727, %v763
  %v800 = vmax.f32 %v728, %v764
  %v801 = vmax.f32 %v729, %v765
  %v802 = vmax.f32 %v730, %v766
  %v803 = vld [vmem:[%s2] sm:$0x1]
  %v805 = vlaneseq
  %v806 = vshrl.u32 %v805, 7
  %v807 = vsub.s32 0, %v806
  %v808 = vrot.slane %v803, %v807
  %v810 = vadd.f32 %v767, %v808
  %v811 = vadd.f32 %v768, %v808
  %v812 = vadd.f32 %v769, %v808
  %v813 = vadd.f32 %v770, %v808
  %v814 = vadd.f32 %v771, %v808
  %v815 = vadd.f32 %v772, %v808
  %v816 = vadd.f32 %v773, %v808
  %v817 = vadd.f32 %v774, %v808
  %v818 = vadd.f32 %v775, %v808
  %v819 = vadd.f32 %v776, %v808
  %v820 = vadd.f32 %v777, %v808
  %v821 = vadd.f32 %v778, %v808
  %v822 = vadd.f32 %v779, %v808
  %v823 = vadd.f32 %v780, %v808
  %v824 = vadd.f32 %v781, %v808
  %v825 = vadd.f32 %v782, %v808
  %v826 = vadd.f32 %v783, %v808
  %v827 = vadd.f32 %v784, %v808
  %v828 = vadd.f32 %v785, %v808
  %v829 = vadd.f32 %v786, %v808
  %v830 = vadd.f32 %v787, %v808
  %v831 = vadd.f32 %v788, %v808
  %v832 = vadd.f32 %v789, %v808
  %v833 = vadd.f32 %v790, %v808
  %v834 = vadd.f32 %v791, %v808
  %v835 = vadd.f32 %v792, %v808
  %v836 = vadd.f32 %v793, %v808
  %v837 = vadd.f32 %v794, %v808
  %v838 = vadd.f32 %v795, %v808
  %v839 = vadd.f32 %v796, %v808
  %v840 = vadd.f32 %v797, %v808
  %v841 = vadd.f32 %v798, %v808
  %v842 = vadd.f32 %v799, %v808
  %v843 = vadd.f32 %v800, %v808
  %v844 = vadd.f32 %v801, %v808
  %v845 = vadd.f32 %v802, %v808
  %v846 = vmax.f32 %v810, 0.0
  %v847 = vmax.f32 %v811, 0.0
  %v848 = vmax.f32 %v812, 0.0
  %v849 = vmax.f32 %v813, 0.0
  %v850 = vmax.f32 %v814, 0.0
  %v851 = vmax.f32 %v815, 0.0
  %v852 = vmax.f32 %v816, 0.0
  %v853 = vmax.f32 %v817, 0.0
  %v854 = vmax.f32 %v818, 0.0
  %v855 = vmax.f32 %v819, 0.0
  %v856 = vmax.f32 %v820, 0.0
  %v857 = vmax.f32 %v821, 0.0
  %v858 = vmax.f32 %v822, 0.0
  %v859 = vmax.f32 %v823, 0.0
  %v860 = vmax.f32 %v824, 0.0
  %v861 = vmax.f32 %v825, 0.0
  %v862 = vmax.f32 %v826, 0.0
  %v863 = vmax.f32 %v827, 0.0
  %v864 = vmax.f32 %v828, 0.0
  %v865 = vmax.f32 %v829, 0.0
  %v866 = vmax.f32 %v830, 0.0
  %v867 = vmax.f32 %v831, 0.0
  %v868 = vmax.f32 %v832, 0.0
  %v869 = vmax.f32 %v833, 0.0
  %v870 = vmax.f32 %v834, 0.0
  %v871 = vmax.f32 %v835, 0.0
  %v872 = vmax.f32 %v836, 0.0
  %v873 = vmax.f32 %v837, 0.0
  %v874 = vmax.f32 %v838, 0.0
  %v875 = vmax.f32 %v839, 0.0
  %v876 = vmax.f32 %v840, 0.0
  %v877 = vmax.f32 %v841, 0.0
  %v878 = vmax.f32 %v842, 0.0
  %v879 = vmax.f32 %v843, 0.0
  %v880 = vmax.f32 %v844, 0.0
  %v881 = vmax.f32 %v845, 0.0
  %v882 = vpack.c.bf16 %v847, %v846
  %v883 = vpack.c.bf16 %v849, %v848
  %v884 = vpack.c.bf16 %v851, %v850
  %v885 = vpack.c.bf16 %v853, %v852
  %v886 = vpack.c.bf16 %v855, %v854
  %v887 = vpack.c.bf16 %v857, %v856
  %v888 = vpack.c.bf16 %v859, %v858
  %v889 = vpack.c.bf16 %v861, %v860
  %v890 = vpack.c.bf16 %v863, %v862
  %v891 = vpack.c.bf16 %v865, %v864
  %v892 = vpack.c.bf16 %v867, %v866
  %v893 = vpack.c.bf16 %v869, %v868
  %v894 = vpack.c.bf16 %v871, %v870
  %v895 = vpack.c.bf16 %v873, %v872
  %v896 = vpack.c.bf16 %v875, %v874
  %v897 = vpack.c.bf16 %v877, %v876
  %v898 = vpack.c.bf16 %v879, %v878
  %v899 = vpack.c.bf16 %v881, %v880
  %v918 = vunpack.c.l.b16 %v882
  %v919 = vunpack.c.h.b16 %v882
  %v920 = vunpack.c.l.b16 %v883
  %v921 = vunpack.c.h.b16 %v883
  %v922 = vunpack.c.l.b16 %v884
  %v923 = vunpack.c.h.b16 %v884
  %v924 = vunpack.c.l.b16 %v885
  %v925 = vunpack.c.h.b16 %v885
  %v926 = vunpack.c.l.b16 %v886
  %v927 = vunpack.c.h.b16 %v886
  %v928 = vunpack.c.l.b16 %v887
  %v929 = vunpack.c.h.b16 %v887
  %v930 = vunpack.c.l.b16 %v888
  %v931 = vunpack.c.h.b16 %v888
  %v932 = vunpack.c.l.b16 %v889
  %v933 = vunpack.c.h.b16 %v889
  %v934 = vunpack.c.l.b16 %v890
  %v935 = vunpack.c.h.b16 %v890
  %v936 = vunpack.c.l.b16 %v891
  %v937 = vunpack.c.h.b16 %v891
  %v938 = vunpack.c.l.b16 %v892
  %v939 = vunpack.c.h.b16 %v892
  %v940 = vunpack.c.l.b16 %v893
  %v941 = vunpack.c.h.b16 %v893
  %v942 = vunpack.c.l.b16 %v894
  %v943 = vunpack.c.h.b16 %v894
  %v944 = vunpack.c.l.b16 %v895
  %v945 = vunpack.c.h.b16 %v895
  %v946 = vunpack.c.l.b16 %v896
  %v947 = vunpack.c.h.b16 %v896
  %v948 = vunpack.c.l.b16 %v897
  %v949 = vunpack.c.h.b16 %v897
  %v950 = vunpack.c.l.b16 %v898
  %v951 = vunpack.c.h.b16 %v898
  %v952 = vunpack.c.l.b16 %v899
  %v953 = vunpack.c.h.b16 %v899
  %v954 = vpack.c.b16 %v918, %v918
  %v955 = vpack.c.b16 %v919, %v919
  %v956 = vpack.c.b16 %v920, %v920
  %v957 = vpack.c.b16 %v921, %v921
  %v958 = vpack.c.b16 %v922, %v922
  %v959 = vpack.c.b16 %v923, %v923
  %v960 = vpack.c.b16 %v924, %v924
  %v961 = vpack.c.b16 %v925, %v925
  %v962 = vpack.c.b16 %v926, %v926
  %v963 = vpack.c.b16 %v927, %v927
  %v964 = vpack.c.b16 %v928, %v928
  %v965 = vpack.c.b16 %v929, %v929
  %v966 = vpack.c.b16 %v930, %v930
  %v967 = vpack.c.b16 %v931, %v931
  %v968 = vpack.c.b16 %v932, %v932
  %v969 = vpack.c.b16 %v933, %v933
  %v970 = vpack.c.b16 %v934, %v934
  %v971 = vpack.c.b16 %v935, %v935
  %v972 = vpack.c.b16 %v936, %v936
  %v973 = vpack.c.b16 %v937, %v937
  %v974 = vpack.c.b16 %v938, %v938
  %v975 = vpack.c.b16 %v939, %v939
  %v976 = vpack.c.b16 %v940, %v940
  %v977 = vpack.c.b16 %v941, %v941
  %v978 = vpack.c.b16 %v942, %v942
  %v979 = vpack.c.b16 %v943, %v943
  %v980 = vpack.c.b16 %v944, %v944
  %v981 = vpack.c.b16 %v945, %v945
  %v982 = vpack.c.b16 %v946, %v946
  %v983 = vpack.c.b16 %v947, %v947
  %v984 = vpack.c.b16 %v948, %v948
  %v985 = vpack.c.b16 %v949, %v949
  %v986 = vpack.c.b16 %v950, %v950
  %v987 = vpack.c.b16 %v951, %v951
  %v988 = vpack.c.b16 %v952, %v952
  %v989 = vpack.c.b16 %v953, %v953
  %1026 = vst [vmem:[%s3] sm:$0xf] %v954
  %1027 = vst [vmem:[%s3 + $0x4] sm:$0xf] %v955
  %1028 = vst [vmem:[%s3 + $0x8] sm:$0xf] %v956
  %1029 = vst [vmem:[%s3 + $0xc] sm:$0xf] %v957
  %1030 = vst [vmem:[%s3 + $0x10] sm:$0xf] %v958
  %1031 = vst [vmem:[%s3 + $0x14] sm:$0xf] %v959
  %1032 = vst [vmem:[%s3 + $0x18] sm:$0xf] %v960
  %1033 = vst [vmem:[%s3 + $0x1c] sm:$0xf] %v961
  %1034 = vst [vmem:[%s3 + $0x20] sm:$0xf] %v962
  %1035 = vst [vmem:[%s3 + $0x24] sm:$0xf] %v963
  %1036 = vst [vmem:[%s3 + $0x28] sm:$0xf] %v964
  %1037 = vst [vmem:[%s3 + $0x2c] sm:$0xf] %v965
  %1038 = vst [vmem:[%s3 + $0x30] sm:$0xf] %v966
  %1039 = vst [vmem:[%s3 + $0x34] sm:$0xf] %v967
  %1040 = vst [vmem:[%s3 + $0x38] sm:$0xf] %v968
  %1041 = vst [vmem:[%s3 + $0x3c] sm:$0xf] %v969
  %1042 = vst [vmem:[%s3 + $0x40] sm:$0xf] %v970
  %1043 = vst [vmem:[%s3 + $0x44] sm:$0xf] %v971
  %1044 = vst [vmem:[%s3 + $0x48] sm:$0xf] %v972
  %1045 = vst [vmem:[%s3 + $0x4c] sm:$0xf] %v973
  %1046 = vst [vmem:[%s3 + $0x50] sm:$0xf] %v974
  %1047 = vst [vmem:[%s3 + $0x54] sm:$0xf] %v975
  %1048 = vst [vmem:[%s3 + $0x58] sm:$0xf] %v976
  %1049 = vst [vmem:[%s3 + $0x5c] sm:$0xf] %v977
  %1050 = vst [vmem:[%s3 + $0x60] sm:$0xf] %v978
  %1051 = vst [vmem:[%s3 + $0x64] sm:$0xf] %v979
  %1052 = vst [vmem:[%s3 + $0x68] sm:$0xf] %v980
  %1053 = vst [vmem:[%s3 + $0x6c] sm:$0xf] %v981
  %1054 = vst [vmem:[%s3 + $0x70] sm:$0xf] %v982
  %1055 = vst [vmem:[%s3 + $0x74] sm:$0xf] %v983
  %1056 = vst [vmem:[%s3 + $0x78] sm:$0xf] %v984
  %1057 = vst [vmem:[%s3 + $0x7c] sm:$0xf] %v985
  %1058 = vst [vmem:[%s3 + $0x80] sm:$0xf] %v986
  %1059 = vst [vmem:[%s3 + $0x84] sm:$0xf] %v987
  %1060 = vst [vmem:[%s3 + $0x88] sm:$0xf] %v988
  %1061 = vst [vmem:[%s3 + $0x8c] sm:$0xf] %v989
  // Predicated region
  $region14: #{lenet5_forward.3} parent=0 // pred_check
    _
  $region15: #{lenet5_forward.3} parent=0 // pred_check_branch
    %1063 = sbr.rel (0) target = $region17
  $region16: #{lenet5_forward.3} parent=0 // pred_region
    _
  $region17: #{lenet5_forward.3} parent=0 // pred_fallthru
    _
  // Predicated region
  $region18: #{lenet5_forward.3} parent=0 // pred_check
    _
  $region19: #{lenet5_forward.3} parent=0 // pred_check_branch
    %1065 = sbr.rel (0) target = $region21
  $region20: #{lenet5_forward.3} parent=0 // pred_region
    _
  $region21: #{lenet5_forward.3} parent=0 // pred_fallthru
    _

// kernel: lenet5_forward.4
$region0: #{lenet5_forward.4}
  #allocation0 [shape = 'u32[]', space=smem, size = 0x4, offset = 0x4, fixed_abs, tag = 'smem constant byte address 0x4 - core index']
  #allocation1 [shape = 'u32[144,128]{1,0:T(1,128)}', space=vmem, size = 0x12000, scoped, tag = 'internal scratch']
  %s0 = inlined_call_operand.vmem [shape: bf16[32,216], index: 0, kind: input, shape index: {}]
  %s1 = inlined_call_operand.vmem [shape: bf16[216,512], index: 1, kind: input, shape index: {}]
  %s2 = inlined_call_operand.vmem [shape: f32[1,128], index: 2, kind: input, shape index: {}]
  %s3 = inlined_call_operand.vmem [shape: bf16[32,128], index: 3, kind: output, shape index: {}]
  %s4 = sld [smem:[#allocation0]]
  $region22: #{lenet5_forward.4} parent=0
    _
  %s6 = ssub.s32 1, %s4
  %s7 = scalar_select 0, %s6, %s4
  // Predicated region
  $region2: #{lenet5_forward.4} parent=0 // pred_check
    _
  $region3: #{lenet5_forward.4} parent=0 // pred_check_branch
    %9 = sbr.rel (0) target = $region5
  $region4: #{lenet5_forward.4} parent=0 // pred_region
    _
  $region5: #{lenet5_forward.4} parent=0 // pred_fallthru
    _
  // Predicated region
  $region6: #{lenet5_forward.4} parent=0 // pred_check
    _
  $region7: #{lenet5_forward.4} parent=0 // pred_check_branch
    %11 = sbr.rel (0) target = $region9
  $region8: #{lenet5_forward.4} parent=0 // pred_region
    _
  $region9: #{lenet5_forward.4} parent=0 // pred_fallthru
    _
  // Predicated region
  $region10: #{lenet5_forward.4} parent=0 // pred_check
    _
  $region11: #{lenet5_forward.4} parent=0 // pred_check_branch
    %13 = sbr.rel (0) target = $region13
  $region12: #{lenet5_forward.4} parent=0 // pred_region
    _
  $region13: #{lenet5_forward.4} parent=0 // pred_fallthru
    _
  %v15 = vld [vmem:[%s0] sm:$0xff]
  %v16 = vld [vmem:[%s0 + $0x8] sm:$0xff]
  %v17 = vld [vmem:[%s0 + $0x10] sm:$0xff]
  %v18 = vld [vmem:[%s0 + $0x18] sm:$0xff]
  %v19 = vld [vmem:[%s1] sm:$0xff]
  %v20 = vld [vmem:[%s1 + $0x8] sm:$0xff]
  %v21 = vld [vmem:[%s1 + $0x10] sm:$0xff]
  %v22 = vld [vmem:[%s1 + $0x18] sm:$0xff]
  %v23 = vld [vmem:[%s1 + $0x20] sm:$0xff]
  %v24 = vld [vmem:[%s1 + $0x28] sm:$0xff]
  %v25 = vld [vmem:[%s1 + $0x30] sm:$0xff]
  %v26 = vld [vmem:[%s1 + $0x38] sm:$0xff]
  %v27 = vld [vmem:[%s1 + $0x40] sm:$0xff]
  %v28 = vld [vmem:[%s1 + $0x48] sm:$0xff]
  %v29 = vld [vmem:[%s1 + $0x50] sm:$0xff]
  %v30 = vld [vmem:[%s1 + $0x58] sm:$0xff]
  %v31 = vld [vmem:[%s1 + $0x60] sm:$0xff]
  %v32 = vld [vmem:[%s1 + $0x68] sm:$0xff]
  %v33 = vld [vmem:[%s1 + $0x70] sm:$0xff]
  %v34 = vld [vmem:[%s1 + $0x78] sm:$0xff]
  %v35 = vld [vmem:[%s1 + $0x80] sm:$0xff]
  %v36 = vld [vmem:[%s1 + $0x88] sm:$0xff]
  %v37 = vld [vmem:[%s1 + $0x90] sm:$0xff]
  %v38 = vld [vmem:[%s1 + $0x98] sm:$0xff]
  %v39 = vld [vmem:[%s1 + $0xa0] sm:$0xff]
  %v40 = vld [vmem:[%s1 + $0xa8] sm:$0xff]
  %v41 = vld [vmem:[%s1 + $0xb0] sm:$0xff]
  %v42 = vld [vmem:[%s1 + $0xb8] sm:$0xff]
  %v43 = vld [vmem:[%s1 + $0xc0] sm:$0xff]
  %v44 = vld [vmem:[%s1 + $0xc8] sm:$0xff]
  %v45 = vld [vmem:[%s1 + $0xd0] sm:$0xff]
  %v46 = vld [vmem:[%s1 + $0xd8] sm:$0xff]
  %v47 = vld [vmem:[%s1 + $0xe0] sm:$0xff]
  %v48 = vld [vmem:[%s1 + $0xe8] sm:$0xff]
  %v49 = vld [vmem:[%s1 + $0xf0] sm:$0xff]
  %v50 = vld [vmem:[%s1 + $0xf8] sm:$0xff]
  %v51 = vld [vmem:[%s1 + $0x100] sm:$0xff]
  %v52 = vld [vmem:[%s1 + $0x108] sm:$0xff]
  %v53 = vld [vmem:[%s1 + $0x110] sm:$0xff]
  %v54 = vld [vmem:[%s1 + $0x118] sm:$0xff]
  %v55 = vld [vmem:[%s1 + $0x120] sm:$0xff]
  %v56 = vld [vmem:[%s1 + $0x128] sm:$0xff]
  %v57 = vld [vmem:[%s1 + $0x130] sm:$0xff]
  %v58 = vld [vmem:[%s1 + $0x138] sm:$0xff]
  %v59 = vld [vmem:[%s1 + $0x140] sm:$0xff]
  %v60 = vld [vmem:[%s1 + $0x148] sm:$0xff]
  %v61 = vld [vmem:[%s1 + $0x150] sm:$0xff]
  %v62 = vld [vmem:[%s1 + $0x158] sm:$0xff]
  %v63 = vld [vmem:[%s1 + $0x160] sm:$0xff]
  %v64 = vld [vmem:[%s1 + $0x168] sm:$0xff]
  %v65 = vld [vmem:[%s1 + $0x170] sm:$0xff]
  %v66 = vld [vmem:[%s1 + $0x178] sm:$0xff]
  %v67 = vld [vmem:[%s1 + $0x180] sm:$0xff]
  %v68 = vld [vmem:[%s1 + $0x188] sm:$0xff]
  %v69 = vld [vmem:[%s1 + $0x190] sm:$0xff]
  %v70 = vld [vmem:[%s1 + $0x198] sm:$0xff]
  %v71 = vld [vmem:[%s1 + $0x1a0] sm:$0xff]
  %v72 = vld [vmem:[%s1 + $0x1a8] sm:$0xff]
  %v77 = vunpack.c.l.b16 %v15
  %v78 = vunpack.c.h.b16 %v15
  %v79 = vunpack.c.l.b16 %v16
  %v80 = vunpack.c.h.b16 %v16
  %v81 = vunpack.c.l.b16 %v17
  %v82 = vunpack.c.h.b16 %v17
  %v83 = vunpack.c.l.b16 %v18
  %v84 = vunpack.c.h.b16 %v18
  %v85 = vpack.c.b16 %v79, %v77
  %v86 = vpack.c.b16 %v80, %v78
  %v87 = vpack.c.b16 %v83, %v81
  %v88 = vpack.c.b16 %v84, %v82
  %v145 = vunpack.c.l.b16 %v19
  %v146 = vunpack.c.h.b16 %v19
  %v147 = vunpack.c.l.b16 %v20
  %v148 = vunpack.c.h.b16 %v20
  %v149 = vunpack.c.l.b16 %v21
  %v150 = vunpack.c.h.b16 %v21
  %v151 = vunpack.c.l.b16 %v22
  %v152 = vunpack.c.h.b16 %v22
  %v153 = vunpack.c.l.b16 %v23
  %v154 = vunpack.c.h.b16 %v23
  %v155 = vunpack.c.l.b16 %v24
  %v156 = vunpack.c.h.b16 %v24
  %v157 = vunpack.c.l.b16 %v25
  %v158 = vunpack.c.h.b16 %v25
  %v159 = vunpack.c.l.b16 %v26
  %v160 = vunpack.c.h.b16 %v26
  %v161 = vunpack.c.l.b16 %v27
  %v162 = vunpack.c.h.b16 %v27
  %v163 = vunpack.c.l.b16 %v28
  %v164 = vunpack.c.h.b16 %v28
  %v165 = vunpack.c.l.b16 %v29
  %v166 = vunpack.c.h.b16 %v29
  %v167 = vunpack.c.l.b16 %v30
  %v168 = vunpack.c.h.b16 %v30
  %v169 = vunpack.c.l.b16 %v31
  %v170 = vunpack.c.h.b16 %v31
  %v171 = vunpack.c.l.b16 %v32
  %v172 = vunpack.c.h.b16 %v32
  %v173 = vunpack.c.l.b16 %v33
  %v174 = vunpack.c.h.b16 %v33
  %v175 = vunpack.c.l.b16 %v34
  %v176 = vunpack.c.h.b16 %v34
  %v177 = vunpack.c.l.b16 %v35
  %v178 = vunpack.c.h.b16 %v35
  %v179 = vunpack.c.l.b16 %v36
  %v180 = vunpack.c.h.b16 %v36
  %v181 = vunpack.c.l.b16 %v37
  %v182 = vunpack.c.h.b16 %v37
  %v183 = vunpack.c.l.b16 %v38
  %v184 = vunpack.c.h.b16 %v38
  %v185 = vunpack.c.l.b16 %v39
  %v186 = vunpack.c.h.b16 %v39
  %v187 = vunpack.c.l.b16 %v40
  %v188 = vunpack.c.h.b16 %v40
  %v189 = vunpack.c.l.b16 %v41
  %v190 = vunpack.c.h.b16 %v41
  %v191 = vunpack.c.l.b16 %v42
  %v192 = vunpack.c.h.b16 %v42
  %v193 = vunpack.c.l.b16 %v43
  %v194 = vunpack.c.h.b16 %v43
  %v195 = vunpack.c.l.b16 %v44
  %v196 = vunpack.c.h.b16 %v44
  %v197 = vunpack.c.l.b16 %v45
  %v198 = vunpack.c.h.b16 %v45
  %v199 = vunpack.c.l.b16 %v46
  %v200 = vunpack.c.h.b16 %v46
  %v201 = vunpack.c.l.b16 %v47
  %v202 = vunpack.c.h.b16 %v47
  %v203 = vunpack.c.l.b16 %v48
  %v204 = vunpack.c.h.b16 %v48
  %v205 = vunpack.c.l.b16 %v49
  %v206 = vunpack.c.h.b16 %v49
  %v207 = vunpack.c.l.b16 %v50
  %v208 = vunpack.c.h.b16 %v50
  %v209 = vunpack.c.l.b16 %v51
  %v210 = vunpack.c.h.b16 %v51
  %v211 = vunpack.c.l.b16 %v52
  %v212 = vunpack.c.h.b16 %v52
  %v213 = vunpack.c.l.b16 %v53
  %v214 = vunpack.c.h.b16 %v53
  %v215 = vunpack.c.l.b16 %v54
  %v216 = vunpack.c.h.b16 %v54
  %v217 = vunpack.c.l.b16 %v55
  %v218 = vunpack.c.h.b16 %v55
  %v219 = vunpack.c.l.b16 %v56
  %v220 = vunpack.c.h.b16 %v56
  %v221 = vunpack.c.l.b16 %v57
  %v222 = vunpack.c.h.b16 %v57
  %v223 = vunpack.c.l.b16 %v58
  %v224 = vunpack.c.h.b16 %v58
  %v225 = vunpack.c.l.b16 %v59
  %v226 = vunpack.c.h.b16 %v59
  %v227 = vunpack.c.l.b16 %v60
  %v228 = vunpack.c.h.b16 %v60
  %v229 = vunpack.c.l.b16 %v61
  %v230 = vunpack.c.h.b16 %v61
  %v231 = vunpack.c.l.b16 %v62
  %v232 = vunpack.c.h.b16 %v62
  %v233 = vunpack.c.l.b16 %v63
  %v234 = vunpack.c.h.b16 %v63
  %v235 = vunpack.c.l.b16 %v64
  %v236 = vunpack.c.h.b16 %v64
  %v237 = vunpack.c.l.b16 %v65
  %v238 = vunpack.c.h.b16 %v65
  %v239 = vunpack.c.l.b16 %v66
  %v240 = vunpack.c.h.b16 %v66
  %v241 = vunpack.c.l.b16 %v67
  %v242 = vunpack.c.h.b16 %v67
  %v243 = vunpack.c.l.b16 %v68
  %v244 = vunpack.c.h.b16 %v68
  %v245 = vunpack.c.l.b16 %v69
  %v246 = vunpack.c.h.b16 %v69
  %v247 = vunpack.c.l.b16 %v70
  %v248 = vunpack.c.h.b16 %v70
  %v249 = vunpack.c.l.b16 %v71
  %v250 = vunpack.c.h.b16 %v71
  %v251 = vunpack.c.l.b16 %v72
  %v252 = vunpack.c.h.b16 %v72
  %v253 = vpack.c.b16 %v149, %v145
  %v254 = vpack.c.b16 %v150, %v146
  %v255 = vpack.c.b16 %v151, %v147
  %v256 = vpack.c.b16 %v152, %v148
  %v257 = vpack.c.b16 %v157, %v153
  %v258 = vpack.c.b16 %v158, %v154
  %v259 = vpack.c.b16 %v159, %v155
  %v260 = vpack.c.b16 %v160, %v156
  %v261 = vpack.c.b16 %v165, %v161
  %v262 = vpack.c.b16 %v166, %v162
  %v263 = vpack.c.b16 %v167, %v163
  %v264 = vpack.c.b16 %v168, %v164
  %v265 = vpack.c.b16 %v173, %v169
  %v266 = vpack.c.b16 %v174, %v170
  %v267 = vpack.c.b16 %v175, %v171
  %v268 = vpack.c.b16 %v176, %v172
  %v269 = vpack.c.b16 %v181, %v177
  %v270 = vpack.c.b16 %v182, %v178
  %v271 = vpack.c.b16 %v183, %v179
  %v272 = vpack.c.b16 %v184, %v180
  %v273 = vpack.c.b16 %v189, %v185
  %v274 = vpack.c.b16 %v190, %v186
  %v275 = vpack.c.b16 %v191, %v187
  %v276 = vpack.c.b16 %v192, %v188
  %v277 = vpack.c.b16 %v197, %v193
  %v278 = vpack.c.b16 %v198, %v194
  %v279 = vpack.c.b16 %v199, %v195
  %v280 = vpack.c.b16 %v200, %v196
  %v281 = vpack.c.b16 %v205, %v201
  %v282 = vpack.c.b16 %v206, %v202
  %v283 = vpack.c.b16 %v207, %v203
  %v284 = vpack.c.b16 %v208, %v204
  %v285 = vpack.c.b16 %v213, %v209
  %v286 = vpack.c.b16 %v214, %v210
  %v287 = vpack.c.b16 %v215, %v211
  %v288 = vpack.c.b16 %v216, %v212
  %v289 = vpack.c.b16 %v221, %v217
  %v290 = vpack.c.b16 %v222, %v218
  %v291 = vpack.c.b16 %v223, %v219
  %v292 = vpack.c.b16 %v224, %v220
  %v293 = vpack.c.b16 %v229, %v225
  %v294 = vpack.c.b16 %v230, %v226
  %v295 = vpack.c.b16 %v231, %v227
  %v296 = vpack.c.b16 %v232, %v228
  %v297 = vpack.c.b16 %v237, %v233
  %v298 = vpack.c.b16 %v238, %v234
  %v299 = vpack.c.b16 %v239, %v235
  %v300 = vpack.c.b16 %v240, %v236
  %v301 = vpack.c.b16 %v245, %v241
  %v302 = vpack.c.b16 %v246, %v242
  %v303 = vpack.c.b16 %v247, %v243
  %v304 = vpack.c.b16 %v248, %v244
  %v305 = vpack.c.b16 %v249, %v249
  %v306 = vpack.c.b16 %v250, %v250
  %v307 = vpack.c.b16 %v251, %v251
  %v308 = vpack.c.b16 %v252, %v252
  %vm361 = vcmask 719872
  %v363 = vsel %vm361, %v86, 0
  %v366 = vsel %vm361, %v88, 0
  %vm368 = vcmask 1043456
  %v370 = vsel %vm368, %v305, 0
  %v373 = vsel %vm368, %v306, 0
  %v376 = vsel %vm368, %v307, 0
  %v379 = vsel %vm368, %v308, 0
  %381 = vmatprep.subr.bf16.mxu0 %v254
  %382 = vmatpush1.bf16.msra.mxu0 %v253
  %383 = vmatprep.subr.bf16.mxu0 %v258
  %384 = vmatpush1.bf16.msra.mxu0 %v257
  %385 = vmatprep.subr.bf16.mxu0 %v262
  %386 = vmatpush1.bf16.msra.mxu0 %v261
  %387 = vmatprep.subr.bf16.mxu0 %v266
  %388 = vmatpush1.bf16.msra.mxu0 %v265
  %389 = vmatprep.subr.bf16.mxu0 %v270
  %390 = vmatpush1.bf16.msra.mxu0 %v269
  %391 = vmatprep.subr.bf16.mxu0 %v274
  %392 = vmatpush1.bf16.msra.mxu0 %v273
  %393 = vmatprep.subr.bf16.mxu0 %v278
  %394 = vmatpush1.bf16.msra.mxu0 %v277
  %395 = vmatprep.subr.bf16.mxu0 %v282
  %396 = vmatpush1.bf16.msra.mxu0 %v281
  %397 = vmatprep.subr.bf16.mxu0 %v286
  %398 = vmatpush1.bf16.msra.mxu0 %v285
  %399 = vmatprep.subr.bf16.mxu0 %v290
  %400 = vmatpush1.bf16.msra.mxu0 %v289
  %401 = vmatprep.subr.bf16.mxu0 %v294
  %402 = vmatpush1.bf16.msra.mxu0 %v293
  %403 = vmatprep.subr.bf16.mxu0 %v298
  %404 = vmatpush1.bf16.msra.mxu0 %v297
  %405 = vmatprep.subr.bf16.mxu0 %v302
  %406 = vmatpush1.bf16.msra.mxu0 %v301
  %407 = vmatprep.subr.bf16.mxu0 %v373
  %408 = vmatpush1.bf16.msra.mxu0 %v370
  %409 = vmatprep.subr.bf16.mxu0 0
  %410 = vmatpush1.bf16.msra.mxu0 0
  %411 = vmatprep.subr.bf16.mxu0 0
  %412 = vmatpush1.bf16.msra.mxu0 0
  %413 = vmatprep.mubr.bf16.mxu0 %v363
  %414 = vmatmul.mubr.bf16.gmra.mrb[0].mxu0 %v85
  %v415 = vpop.f32.mrb[0].mxu0
  %v416 = vadd.f32 0.0, %v415
  %v417 = vpop.f32.mrb[0].mxu0
  %v418 = vadd.f32 0.0, %v417
  %v419 = vpop.f32.mrb[0].mxu0
  %v420 = vadd.f32 0.0, %v419
  %v421 = vpop.f32.mrb[0].mxu0
  %v422 = vadd.f32 0.0, %v421
  %423 = vmatprep.mubr.bf16.mxu0 %v366
  %424 = vmatmul.mubr.bf16.gmra.mrb[0].mxu0 %v87
  %v425 = vpop.f32.mrb[0].mxu0
  %v426 = vadd.f32 0.0, %v425
  %v427 = vpop.f32.mrb[0].mxu0
  %v428 = vadd.f32 0.0, %v427
  %v429 = vpop.f32.mrb[0].mxu0
  %v430 = vadd.f32 0.0, %v429
  %v431 = vpop.f32.mrb[0].mxu0
  %v432 = vadd.f32 0.0, %v431
  %433 = vdwg.mxu0
  %434 = vmatprep.subr.bf16.mxu0 %v256
  %435 = vmatpush1.bf16.msra.mxu0 %v255
  %436 = vmatprep.subr.bf16.mxu0 %v260
  %437 = vmatpush1.bf16.msra.mxu0 %v259
  %438 = vmatprep.subr.bf16.mxu0 %v264
  %439 = vmatpush1.bf16.msra.mxu0 %v263
  %440 = vmatprep.subr.bf16.mxu0 %v268
  %441 = vmatpush1.bf16.msra.mxu0 %v267
  %442 = vmatprep.subr.bf16.mxu0 %v272
  %443 = vmatpush1.bf16.msra.mxu0 %v271
  %444 = vmatprep.subr.bf16.mxu0 %v276
  %445 = vmatpush1.bf16.msra.mxu0 %v275
  %446 = vmatprep.subr.bf16.mxu0 %v280
  %447 = vmatpush1.bf16.msra.mxu0 %v279
  %448 = vmatprep.subr.bf16.mxu0 %v284
  %449 = vmatpush1.bf16.msra.mxu0 %v283
  %450 = vmatprep.subr.bf16.mxu0 %v288
  %451 = vmatpush1.bf16.msra.mxu0 %v287
  %452 = vmatprep.subr.bf16.mxu0 %v292
  %453 = vmatpush1.bf16.msra.mxu0 %v291
  %454 = vmatprep.subr.bf16.mxu0 %v296
  %455 = vmatpush1.bf16.msra.mxu0 %v295
  %456 = vmatprep.subr.bf16.mxu0 %v300
  %457 = vmatpush1.bf16.msra.mxu0 %v299
  %458 = vmatprep.subr.bf16.mxu0 %v304
  %459 = vmatpush1.bf16.msra.mxu0 %v303
  %460 = vmatprep.subr.bf16.mxu0 %v379
  %461 = vmatpush1.bf16.msra.mxu0 %v376
  %462 = vmatprep.subr.bf16.mxu0 0
  %463 = vmatpush1.bf16.msra.mxu0 0
  %464 = vmatprep.subr.bf16.mxu0 0
  %465 = vmatpush1.bf16.msra.mxu0 0
  %466 = vmatprep.mubr.bf16.mxu0 %v363
  %467 = vmatmul.mubr.bf16.gmra.mrb[0].mxu0 %v85
  %v468 = vpop.f32.mrb[0].mxu0
  %v469 = vadd.f32 0.0, %v468
  %v470 = vpop.f32.mrb[0].mxu0
  %v471 = vadd.f32 0.0, %v470
  %v472 = vpop.f32.mrb[0].mxu0
  %v473 = vadd.f32 0.0, %v472
  %v474 = vpop.f32.mrb[0].mxu0
  %v475 = vadd.f32 0.0, %v474
  %476 = vmatprep.mubr.bf16.mxu0 %v366
  %477 = vmatmul.mubr.bf16.gmra.mrb[0].mxu0 %v87
  %v478 = vpop.f32.mrb[0].mxu0
  %v479 = vadd.f32 0.0, %v478
  %v480 = vpop.f32.mrb[0].mxu0
  %v481 = vadd.f32 0.0, %v480
  %v482 = vpop.f32.mrb[0].mxu0
  %v483 = vadd.f32 0.0, %v482
  %v484 = vpop.f32.mrb[0].mxu0
  %v485 = vadd.f32 0.0, %v484
  %486 = vdwg.mxu0
  %v487 = vmax.f32 %v416, %v418
  %v488 = vmax.f32 %v420, %v422
  %v489 = vmax.f32 %v426, %v428
  %v490 = vmax.f32 %v430, %v432
  %v491 = vmax.f32 %v469, %v471
  %v492 = vmax.f32 %v473, %v475
  %v493 = vmax.f32 %v479, %v481
  %v494 = vmax.f32 %v483, %v485
  %v495 = vmax.f32 %v487, %v491
  %v496 = vmax.f32 %v488, %v492
  %v497 = vmax.f32 %v489, %v493
  %v498 = vmax.f32 %v490, %v494
  %v499 = vld [vmem:[%s2] sm:$0x1]
  %v501 = vlaneseq
  %v502 = vshrl.u32 %v501, 7
  %v503 = vsub.s32 0, %v502
  %v504 = vrot.slane %v499, %v503
  %v506 = vadd.f32 %v495, %v504
  %v507 = vadd.f32 %v496, %v504
  %v508 = vadd.f32 %v497, %v504
  %v509 = vadd.f32 %v498, %v504
  %v510 = vmax.f32 %v506, 0.0
  %v511 = vmax.f32 %v507, 0.0
  %v512 = vmax.f32 %v508, 0.0
  %v513 = vmax.f32 %v509, 0.0
  %v514 = vpack.c.bf16 %v511, %v510
  %v515 = vpack.c.bf16 %v513, %v512
  %v518 = vunpack.c.l.b16 %v514
  %v519 = vunpack.c.h.b16 %v514
  %v520 = vunpack.c.l.b16 %v515
  %v521 = vunpack.c.h.b16 %v515
  %v522 = vpack.c.b16 %v518, %v518
  %v523 = vpack.c.b16 %v519, %v519
  %v524 = vpack.c.b16 %v520, %v520
  %v525 = vpack.c.b16 %v521, %v521
  %530 = vst [vmem:[%s3] sm:$0xf] %v522
  %531 = vst [vmem:[%s3 + $0x4] sm:$0xf] %v523
  %532 = vst [vmem:[%s3 + $0x8] sm:$0xf] %v524
  %533 = vst [vmem:[%s3 + $0xc] sm:$0xf] %v525
  // Predicated region
  $region14: #{lenet5_forward.4} parent=0 // pred_check
    _
  $region15: #{lenet5_forward.4} parent=0 // pred_check_branch
    %535 = sbr.rel (0) target = $region17
  $region16: #{lenet5_forward.4} parent=0 // pred_region
    _
  $region17: #{lenet5_forward.4} parent=0 // pred_fallthru
    _
  // Predicated region
  $region18: #{lenet5_forward.4} parent=0 // pred_check
    _
  $region19: #{lenet5_forward.4} parent=0 // pred_check_branch
    %537 = sbr.rel (0) target = $region21
  $region20: #{lenet5_forward.4} parent=0 // pred_region
    _
  $region21: #{lenet5_forward.4} parent=0 // pred_fallthru
    _

// kernel: lenet5_forward.5
$region0: #{lenet5_forward.5}
  #allocation0 [shape = 'u32[]', space=smem, size = 0x4, offset = 0x4, fixed_abs, tag = 'smem constant byte address 0x4 - core index']
  #allocation1 [shape = 'u32[144,128]{1,0:T(1,128)}', space=vmem, size = 0x12000, scoped, tag = 'internal scratch']
  %s0 = inlined_call_operand.vmem [shape: bf16[8,2048], index: 0, kind: input, shape index: {}]
  %s1 = inlined_call_operand.vmem [shape: bf16[2048,128], index: 1, kind: input, shape index: {}]
  %s2 = inlined_call_operand.vmem [shape: f32[1,128], index: 2, kind: input, shape index: {}]
  %s3 = inlined_call_operand.vmem [shape: bf16[128,128], index: 3, kind: input, shape index: {}]
  %s4 = inlined_call_operand.vmem [shape: f32[1,128], index: 4, kind: input, shape index: {}]
  %s5 = inlined_call_operand.vmem [shape: bf16[128,128], index: 5, kind: input, shape index: {}]
  %s6 = inlined_call_operand.vmem [shape: f32[1,128], index: 6, kind: input, shape index: {}]
  %s7 = inlined_call_operand.vmem [shape: f32[8,128], index: 7, kind: output, shape index: {}]
  %s8 = sld [smem:[#allocation0]]
  $region38: #{lenet5_forward.5} parent=0
    _
  %s10 = ssub.s32 1, %s8
  %s11 = scalar_select 0, %s10, %s8
  // Predicated region
  $region2: #{lenet5_forward.5} parent=0 // pred_check
    _
  $region3: #{lenet5_forward.5} parent=0 // pred_check_branch
    %13 = sbr.rel (0) target = $region5
  $region4: #{lenet5_forward.5} parent=0 // pred_region
    _
  $region5: #{lenet5_forward.5} parent=0 // pred_fallthru
    _
  // Predicated region
  $region6: #{lenet5_forward.5} parent=0 // pred_check
    _
  $region7: #{lenet5_forward.5} parent=0 // pred_check_branch
    %15 = sbr.rel (0) target = $region9
  $region8: #{lenet5_forward.5} parent=0 // pred_region
    _
  $region9: #{lenet5_forward.5} parent=0 // pred_fallthru
    _
  // Predicated region
  $region10: #{lenet5_forward.5} parent=0 // pred_check
    _
  $region11: #{lenet5_forward.5} parent=0 // pred_check_branch
    %17 = sbr.rel (0) target = $region13
  $region12: #{lenet5_forward.5} parent=0 // pred_region
    _
  $region13: #{lenet5_forward.5} parent=0 // pred_fallthru
    _
  // Predicated region
  $region14: #{lenet5_forward.5} parent=0 // pred_check
    _
  $region15: #{lenet5_forward.5} parent=0 // pred_check_branch
    %19 = sbr.rel (0) target = $region17
  $region16: #{lenet5_forward.5} parent=0 // pred_region
    _
  $region17: #{lenet5_forward.5} parent=0 // pred_fallthru
    _
  // Predicated region
  $region18: #{lenet5_forward.5} parent=0 // pred_check
    _
  $region19: #{lenet5_forward.5} parent=0 // pred_check_branch
    %21 = sbr.rel (0) target = $region21
  $region20: #{lenet5_forward.5} parent=0 // pred_region
    _
  $region21: #{lenet5_forward.5} parent=0 // pred_fallthru
    _
  // Predicated region
  $region22: #{lenet5_forward.5} parent=0 // pred_check
    _
  $region23: #{lenet5_forward.5} parent=0 // pred_check_branch
    %23 = sbr.rel (0) target = $region25
  $region24: #{lenet5_forward.5} parent=0 // pred_region
    _
  $region25: #{lenet5_forward.5} parent=0 // pred_fallthru
    _
  // Predicated region
  $region26: #{lenet5_forward.5} parent=0 // pred_check
    _
  $region27: #{lenet5_forward.5} parent=0 // pred_check_branch
    %25 = sbr.rel (0) target = $region29
  $region28: #{lenet5_forward.5} parent=0 // pred_region
    _
  $region29: #{lenet5_forward.5} parent=0 // pred_fallthru
    _
  %v27 = vld [vmem:[%s0] sm:$0xff]
  %v28 = vld [vmem:[%s0 + $0x8] sm:$0xff]
  %v29 = vld [vmem:[%s0 + $0x10] sm:$0xff]
  %v30 = vld [vmem:[%s0 + $0x18] sm:$0xff]
  %v31 = vld [vmem:[%s0 + $0x20] sm:$0xff]
  %v32 = vld [vmem:[%s0 + $0x28] sm:$0xff]
  %v33 = vld [vmem:[%s0 + $0x30] sm:$0xff]
  %v34 = vld [vmem:[%s0 + $0x38] sm:$0xff]
  %v35 = vld [vmem:[%s1] sm:$0xf]
  %v36 = vld [vmem:[%s1 + $0x4] sm:$0xf]
  %v37 = vld [vmem:[%s1 + $0x8] sm:$0xf]
  %v38 = vld [vmem:[%s1 + $0xc] sm:$0xf]
  %v39 = vld [vmem:[%s1 + $0x10] sm:$0xf]
  %v40 = vld [vmem:[%s1 + $0x14] sm:$0xf]
  %v41 = vld [vmem:[%s1 + $0x18] sm:$0xf]
  %v42 = vld [vmem:[%s1 + $0x1c] sm:$0xf]
  %v43 = vld [vmem:[%s1 + $0x20] sm:$0xf]
  %v44 = vld [vmem:[%s1 + $0x24] sm:$0xf]
  %v45 = vld [vmem:[%s1 + $0x28] sm:$0xf]
  %v46 = vld [vmem:[%s1 + $0x2c] sm:$0xf]
  %v47 = vld [vmem:[%s1 + $0x30] sm:$0xf]
  %v48 = vld [vmem:[%s1 + $0x34] sm:$0xf]
  %v49 = vld [vmem:[%s1 + $0x38] sm:$0xf]
  %v50 = vld [vmem:[%s1 + $0x3c] sm:$0xf]
  %v51 = vld [vmem:[%s1 + $0x40] sm:$0xf]
  %v52 = vld [vmem:[%s1 + $0x44] sm:$0xf]
  %v53 = vld [vmem:[%s1 + $0x48] sm:$0xf]
  %v54 = vld [vmem:[%s1 + $0x4c] sm:$0xf]
  %v55 = vld [vmem:[%s1 + $0x50] sm:$0xf]
  %v56 = vld [vmem:[%s1 + $0x54] sm:$0xf]
  %v57 = vld [vmem:[%s1 + $0x58] sm:$0xf]
  %v58 = vld [vmem:[%s1 + $0x5c] sm:$0xf]
  %v59 = vld [vmem:[%s1 + $0x60] sm:$0xf]
  %v60 = vld [vmem:[%s1 + $0x64] sm:$0xf]
  %v61 = vld [vmem:[%s1 + $0x68] sm:$0xf]
  %v62 = vld [vmem:[%s1 + $0x6c] sm:$0xf]
  %v63 = vld [vmem:[%s1 + $0x70] sm:$0xf]
  %v64 = vld [vmem:[%s1 + $0x74] sm:$0xf]
  %v65 = vld [vmem:[%s1 + $0x78] sm:$0xf]
  %v66 = vld [vmem:[%s1 + $0x7c] sm:$0xf]
  %v67 = vld [vmem:[%s1 + $0x80] sm:$0xf]
  %v68 = vld [vmem:[%s1 + $0x84] sm:$0xf]
  %v69 = vld [vmem:[%s1 + $0x88] sm:$0xf]
  %v70 = vld [vmem:[%s1 + $0x8c] sm:$0xf]
  %v71 = vld [vmem:[%s1 + $0x90] sm:$0xf]
  %v72 = vld [vmem:[%s1 + $0x94] sm:$0xf]
  %v73 = vld [vmem:[%s1 + $0x98] sm:$0xf]
  %v74 = vld [vmem:[%s1 + $0x9c] sm:$0xf]
  %v75 = vld [vmem:[%s1 + $0xa0] sm:$0xf]
  %v76 = vld [vmem:[%s1 + $0xa4] sm:$0xf]
  %v77 = vld [vmem:[%s1 + $0xa8] sm:$0xf]
  %v78 = vld [vmem:[%s1 + $0xac] sm:$0xf]
  %v79 = vld [vmem:[%s1 + $0xb0] sm:$0xf]
  %v80 = vld [vmem:[%s1 + $0xb4] sm:$0xf]
  %v81 = vld [vmem:[%s1 + $0xb8] sm:$0xf]
  %v82 = vld [vmem:[%s1 + $0xbc] sm:$0xf]
  %v83 = vld [vmem:[%s1 + $0xc0] sm:$0xf]
  %v84 = vld [vmem:[%s1 + $0xc4] sm:$0xf]
  %v85 = vld [vmem:[%s1 + $0xc8] sm:$0xf]
  %v86 = vld [vmem:[%s1 + $0xcc] sm:$0xf]
  %v87 = vld [vmem:[%s1 + $0xd0] sm:$0xf]
  %v88 = vld [vmem:[%s1 + $0xd4] sm:$0xf]
  %v89 = vld [vmem:[%s1 + $0xd8] sm:$0xf]
  %v90 = vld [vmem:[%s1 + $0xdc] sm:$0xf]
  %v91 = vld [vmem:[%s1 + $0xe0] sm:$0xf]
  %v92 = vld [vmem:[%s1 + $0xe4] sm:$0xf]
  %v93 = vld [vmem:[%s1 + $0xe8] sm:$0xf]
  %v94 = vld [vmem:[%s1 + $0xec] sm:$0xf]
  %v95 = vld [vmem:[%s1 + $0xf0] sm:$0xf]
  %v96 = vld [vmem:[%s1 + $0xf4] sm:$0xf]
  %v97 = vld [vmem:[%s1 + $0xf8] sm:$0xf]
  %v98 = vld [vmem:[%s1 + $0xfc] sm:$0xf]
  %v99 = vld [vmem:[%s1 + $0x100] sm:$0xf]
  %v100 = vld [vmem:[%s1 + $0x104] sm:$0xf]
  %v101 = vld [vmem:[%s1 + $0x108] sm:$0xf]
  %v102 = vld [vmem:[%s1 + $0x10c] sm:$0xf]
  %v103 = vld [vmem:[%s1 + $0x110] sm:$0xf]
  %v104 = vld [vmem:[%s1 + $0x114] sm:$0xf]
  %v105 = vld [vmem:[%s1 + $0x118] sm:$0xf]
  %v106 = vld [vmem:[%s1 + $0x11c] sm:$0xf]
  %v107 = vld [vmem:[%s1 + $0x120] sm:$0xf]
  %v108 = vld [vmem:[%s1 + $0x124] sm:$0xf]
  %v109 = vld [vmem:[%s1 + $0x128] sm:$0xf]
  %v110 = vld [vmem:[%s1 + $0x12c] sm:$0xf]
  %v111 = vld [vmem:[%s1 + $0x130] sm:$0xf]
  %v112 = vld [vmem:[%s1 + $0x134] sm:$0xf]
  %v113 = vld [vmem:[%s1 + $0x138] sm:$0xf]
  %v114 = vld [vmem:[%s1 + $0x13c] sm:$0xf]
  %v115 = vld [vmem:[%s1 + $0x140] sm:$0xf]
  %v116 = vld [vmem:[%s1 + $0x144] sm:$0xf]
  %v117 = vld [vmem:[%s1 + $0x148] sm:$0xf]
  %v118 = vld [vmem:[%s1 + $0x14c] sm:$0xf]
  %v119 = vld [vmem:[%s1 + $0x150] sm:$0xf]
  %v120 = vld [vmem:[%s1 + $0x154] sm:$0xf]
  %v121 = vld [vmem:[%s1 + $0x158] sm:$0xf]
  %v122 = vld [vmem:[%s1 + $0x15c] sm:$0xf]
  %v123 = vld [vmem:[%s1 + $0x160] sm:$0xf]
  %v124 = vld [vmem:[%s1 + $0x164] sm:$0xf]
  %v125 = vld [vmem:[%s1 + $0x168] sm:$0xf]
  %v126 = vld [vmem:[%s1 + $0x16c] sm:$0xf]
  %v127 = vld [vmem:[%s1 + $0x170] sm:$0xf]
  %v128 = vld [vmem:[%s1 + $0x174] sm:$0xf]
  %v129 = vld [vmem:[%s1 + $0x178] sm:$0xf]
  %v130 = vld [vmem:[%s1 + $0x17c] sm:$0xf]
  %v131 = vld [vmem:[%s1 + $0x180] sm:$0xf]
  %v132 = vld [vmem:[%s1 + $0x184] sm:$0xf]
  %v133 = vld [vmem:[%s1 + $0x188] sm:$0xf]
  %v134 = vld [vmem:[%s1 + $0x18c] sm:$0xf]
  %v135 = vld [vmem:[%s1 + $0x190] sm:$0xf]
  %v136 = vld [vmem:[%s1 + $0x194] sm:$0xf]
  %v137 = vld [vmem:[%s1 + $0x198] sm:$0xf]
  %v138 = vld [vmem:[%s1 + $0x19c] sm:$0xf]
  %v139 = vld [vmem:[%s1 + $0x1a0] sm:$0xf]
  %v140 = vld [vmem:[%s1 + $0x1a4] sm:$0xf]
  %v141 = vld [vmem:[%s1 + $0x1a8] sm:$0xf]
  %v142 = vld [vmem:[%s1 + $0x1ac] sm:$0xf]
  %v143 = vld [vmem:[%s1 + $0x1b0] sm:$0xf]
  %v144 = vld [vmem:[%s1 + $0x1b4] sm:$0xf]
  %v145 = vld [vmem:[%s1 + $0x1b8] sm:$0xf]
  %v146 = vld [vmem:[%s1 + $0x1bc] sm:$0xf]
  %v147 = vld [vmem:[%s1 + $0x1c0] sm:$0xf]
  %v148 = vld [vmem:[%s1 + $0x1c4] sm:$0xf]
  %v149 = vld [vmem:[%s1 + $0x1c8] sm:$0xf]
  %v150 = vld [vmem:[%s1 + $0x1cc] sm:$0xf]
  %v151 = vld [vmem:[%s1 + $0x1d0] sm:$0xf]
  %v152 = vld [vmem:[%s1 + $0x1d4] sm:$0xf]
  %v153 = vld [vmem:[%s1 + $0x1d8] sm:$0xf]
  %v154 = vld [vmem:[%s1 + $0x1dc] sm:$0xf]
  %v155 = vld [vmem:[%s1 + $0x1e0] sm:$0xf]
  %v156 = vld [vmem:[%s1 + $0x1e4] sm:$0xf]
  %v157 = vld [vmem:[%s1 + $0x1e8] sm:$0xf]
  %v158 = vld [vmem:[%s1 + $0x1ec] sm:$0xf]
  %v159 = vld [vmem:[%s1 + $0x1f0] sm:$0xf]
  %v160 = vld [vmem:[%s1 + $0x1f4] sm:$0xf]
  %v161 = vld [vmem:[%s1 + $0x1f8] sm:$0xf]
  %v162 = vld [vmem:[%s1 + $0x1fc] sm:$0xf]
  %v163 = vld [vmem:[%s1 + $0x200] sm:$0xf]
  %v164 = vld [vmem:[%s1 + $0x204] sm:$0xf]
  %v165 = vld [vmem:[%s1 + $0x208] sm:$0xf]
  %v166 = vld [vmem:[%s1 + $0x20c] sm:$0xf]
  %v167 = vld [vmem:[%s1 + $0x210] sm:$0xf]
  %v168 = vld [vmem:[%s1 + $0x214] sm:$0xf]
  %v169 = vld [vmem:[%s1 + $0x218] sm:$0xf]
  %v170 = vld [vmem:[%s1 + $0x21c] sm:$0xf]
  %v171 = vld [vmem:[%s1 + $0x220] sm:$0xf]
  %v172 = vld [vmem:[%s1 + $0x224] sm:$0xf]
  %v173 = vld [vmem:[%s1 + $0x228] sm:$0xf]
  %v174 = vld [vmem:[%s1 + $0x22c] sm:$0xf]
  %v175 = vld [vmem:[%s1 + $0x230] sm:$0xf]
  %v176 = vld [vmem:[%s1 + $0x234] sm:$0xf]
  %v177 = vld [vmem:[%s1 + $0x238] sm:$0xf]
  %v178 = vld [vmem:[%s1 + $0x23c] sm:$0xf]
  %v179 = vld [vmem:[%s1 + $0x240] sm:$0xf]
  %v180 = vld [vmem:[%s1 + $0x244] sm:$0xf]
  %v181 = vld [vmem:[%s1 + $0x248] sm:$0xf]
  %v182 = vld [vmem:[%s1 + $0x24c] sm:$0xf]
  %v183 = vld [vmem:[%s1 + $0x250] sm:$0xf]
  %v184 = vld [vmem:[%s1 + $0x254] sm:$0xf]
  %v185 = vld [vmem:[%s1 + $0x258] sm:$0xf]
  %v186 = vld [vmem:[%s1 + $0x25c] sm:$0xf]
  %v187 = vld [vmem:[%s1 + $0x260] sm:$0xf]
  %v188 = vld [vmem:[%s1 + $0x264] sm:$0xf]
  %v189 = vld [vmem:[%s1 + $0x268] sm:$0xf]
  %v190 = vld [vmem:[%s1 + $0x26c] sm:$0xf]
  %v191 = vld [vmem:[%s1 + $0x270] sm:$0xf]
  %v192 = vld [vmem:[%s1 + $0x274] sm:$0xf]
  %v193 = vld [vmem:[%s1 + $0x278] sm:$0xf]
  %v194 = vld [vmem:[%s1 + $0x27c] sm:$0xf]
  %v195 = vld [vmem:[%s1 + $0x280] sm:$0xf]
  %v196 = vld [vmem:[%s1 + $0x284] sm:$0xf]
  %v197 = vld [vmem:[%s1 + $0x288] sm:$0xf]
  %v198 = vld [vmem:[%s1 + $0x28c] sm:$0xf]
  %v199 = vld [vmem:[%s1 + $0x290] sm:$0xf]
  %v200 = vld [vmem:[%s1 + $0x294] sm:$0xf]
  %v201 = vld [vmem:[%s1 + $0x298] sm:$0xf]
  %v202 = vld [vmem:[%s1 + $0x29c] sm:$0xf]
  %v203 = vld [vmem:[%s1 + $0x2a0] sm:$0xf]
  %v204 = vld [vmem:[%s1 + $0x2a4] sm:$0xf]
  %v205 = vld [vmem:[%s1 + $0x2a8] sm:$0xf]
  %v206 = vld [vmem:[%s1 + $0x2ac] sm:$0xf]
  %v207 = vld [vmem:[%s1 + $0x2b0] sm:$0xf]
  %v208 = vld [vmem:[%s1 + $0x2b4] sm:$0xf]
  %v209 = vld [vmem:[%s1 + $0x2b8] sm:$0xf]
  %v210 = vld [vmem:[%s1 + $0x2bc] sm:$0xf]
  %v211 = vld [vmem:[%s1 + $0x2c0] sm:$0xf]
  %v212 = vld [vmem:[%s1 + $0x2c4] sm:$0xf]
  %v213 = vld [vmem:[%s1 + $0x2c8] sm:$0xf]
  %v214 = vld [vmem:[%s1 + $0x2cc] sm:$0xf]
  %v215 = vld [vmem:[%s1 + $0x2d0] sm:$0xf]
  %v216 = vld [vmem:[%s1 + $0x2d4] sm:$0xf]
  %v217 = vld [vmem:[%s1 + $0x2d8] sm:$0xf]
  %v218 = vld [vmem:[%s1 + $0x2dc] sm:$0xf]
  %v219 = vld [vmem:[%s1 + $0x2e0] sm:$0xf]
  %v220 = vld [vmem:[%s1 + $0x2e4] sm:$0xf]
  %v221 = vld [vmem:[%s1 + $0x2e8] sm:$0xf]
  %v222 = vld [vmem:[%s1 + $0x2ec] sm:$0xf]
  %v223 = vld [vmem:[%s1 + $0x2f0] sm:$0xf]
  %v224 = vld [vmem:[%s1 + $0x2f4] sm:$0xf]
  %v225 = vld [vmem:[%s1 + $0x2f8] sm:$0xf]
  %v226 = vld [vmem:[%s1 + $0x2fc] sm:$0xf]
  %v227 = vld [vmem:[%s1 + $0x300] sm:$0xf]
  %v228 = vld [vmem:[%s1 + $0x304] sm:$0xf]
  %v229 = vld [vmem:[%s1 + $0x308] sm:$0xf]
  %v230 = vld [vmem:[%s1 + $0x30c] sm:$0xf]
  %v231 = vld [vmem:[%s1 + $0x310] sm:$0xf]
  %v232 = vld [vmem:[%s1 + $0x314] sm:$0xf]
  %v233 = vld [vmem:[%s1 + $0x318] sm:$0xf]
  %v234 = vld [vmem:[%s1 + $0x31c] sm:$0xf]
  %v235 = vld [vmem:[%s1 + $0x320] sm:$0xf]
  %v236 = vld [vmem:[%s1 + $0x324] sm:$0xf]
  %v237 = vld [vmem:[%s1 + $0x328] sm:$0xf]
  %v238 = vld [vmem:[%s1 + $0x32c] sm:$0xf]
  %v239 = vld [vmem:[%s1 + $0x330] sm:$0xf]
  %v240 = vld [vmem:[%s1 + $0x334] sm:$0xf]
  %v241 = vld [vmem:[%s1 + $0x338] sm:$0xf]
  %v242 = vld [vmem:[%s1 + $0x33c] sm:$0xf]
  %v243 = vld [vmem:[%s1 + $0x340] sm:$0xf]
  %v244 = vld [vmem:[%s1 + $0x344] sm:$0xf]
  %v245 = vld [vmem:[%s1 + $0x348] sm:$0xf]
  %v246 = vld [vmem:[%s1 + $0x34c] sm:$0xf]
  %v247 = vld [vmem:[%s1 + $0x350] sm:$0xf]
  %v248 = vld [vmem:[%s1 + $0x354] sm:$0xf]
  %v249 = vld [vmem:[%s1 + $0x358] sm:$0xf]
  %v250 = vld [vmem:[%s1 + $0x35c] sm:$0xf]
  %v251 = vld [vmem:[%s1 + $0x360] sm:$0xf]
  %v252 = vld [vmem:[%s1 + $0x364] sm:$0xf]
  %v253 = vld [vmem:[%s1 + $0x368] sm:$0xf]
  %v254 = vld [vmem:[%s1 + $0x36c] sm:$0xf]
  %v255 = vld [vmem:[%s1 + $0x370] sm:$0xf]
  %v256 = vld [vmem:[%s1 + $0x374] sm:$0xf]
  %v257 = vld [vmem:[%s1 + $0x378] sm:$0xf]
  %v258 = vld [vmem:[%s1 + $0x37c] sm:$0xf]
  %v259 = vld [vmem:[%s1 + $0x380] sm:$0xf]
  %v260 = vld [vmem:[%s1 + $0x384] sm:$0xf]
  %v261 = vld [vmem:[%s1 + $0x388] sm:$0xf]
  %v262 = vld [vmem:[%s1 + $0x38c] sm:$0xf]
  %v263 = vld [vmem:[%s1 + $0x390] sm:$0xf]
  %v264 = vld [vmem:[%s1 + $0x394] sm:$0xf]
  %v265 = vld [vmem:[%s1 + $0x398] sm:$0xf]
  %v266 = vld [vmem:[%s1 + $0x39c] sm:$0xf]
  %v267 = vld [vmem:[%s1 + $0x3a0] sm:$0xf]
  %v268 = vld [vmem:[%s1 + $0x3a4] sm:$0xf]
  %v269 = vld [vmem:[%s1 + $0x3a8] sm:$0xf]
  %v270 = vld [vmem:[%s1 + $0x3ac] sm:$0xf]
  %v271 = vld [vmem:[%s1 + $0x3b0] sm:$0xf]
  %v272 = vld [vmem:[%s1 + $0x3b4] sm:$0xf]
  %v273 = vld [vmem:[%s1 + $0x3b8] sm:$0xf]
  %v274 = vld [vmem:[%s1 + $0x3bc] sm:$0xf]
  %v275 = vld [vmem:[%s1 + $0x3c0] sm:$0xf]
  %v276 = vld [vmem:[%s1 + $0x3c4] sm:$0xf]
  %v277 = vld [vmem:[%s1 + $0x3c8] sm:$0xf]
  %v278 = vld [vmem:[%s1 + $0x3cc] sm:$0xf]
  %v279 = vld [vmem:[%s1 + $0x3d0] sm:$0xf]
  %v280 = vld [vmem:[%s1 + $0x3d4] sm:$0xf]
  %v281 = vld [vmem:[%s1 + $0x3d8] sm:$0xf]
  %v282 = vld [vmem:[%s1 + $0x3dc] sm:$0xf]
  %v283 = vld [vmem:[%s1 + $0x3e0] sm:$0xf]
  %v284 = vld [vmem:[%s1 + $0x3e4] sm:$0xf]
  %v285 = vld [vmem:[%s1 + $0x3e8] sm:$0xf]
  %v286 = vld [vmem:[%s1 + $0x3ec] sm:$0xf]
  %v287 = vld [vmem:[%s1 + $0x3f0] sm:$0xf]
  %v288 = vld [vmem:[%s1 + $0x3f4] sm:$0xf]
  %v289 = vld [vmem:[%s1 + $0x3f8] sm:$0xf]
  %v290 = vld [vmem:[%s1 + $0x3fc] sm:$0xf]
  %v291 = vld [vmem:[%s2] sm:$0x1]
  %v293 = vlaneseq
  %v294 = vshrl.u32 %v293, 7
  %v295 = vsub.s32 0, %v294
  %v296 = vrot.slane %v291, %v295
  %v306 = vunpack.c.l.b16 %v27
  %v307 = vunpack.c.h.b16 %v27
  %v308 = vunpack.c.l.b16 %v28
  %v309 = vunpack.c.h.b16 %v28
  %v310 = vunpack.c.l.b16 %v29
  %v311 = vunpack.c.h.b16 %v29
  %v312 = vunpack.c.l.b16 %v30
  %v313 = vunpack.c.h.b16 %v30
  %v314 = vunpack.c.l.b16 %v31
  %v315 = vunpack.c.h.b16 %v31
  %v316 = vunpack.c.l.b16 %v32
  %v317 = vunpack.c.h.b16 %v32
  %v318 = vunpack.c.l.b16 %v33
  %v319 = vunpack.c.h.b16 %v33
  %v320 = vunpack.c.l.b16 %v34
  %v321 = vunpack.c.h.b16 %v34
  %v322 = vpack.c.b16 %v306, %v306
  %v323 = vpack.c.b16 %v307, %v307
  %v324 = vpack.c.b16 %v308, %v308
  %v325 = vpack.c.b16 %v309, %v309
  %v326 = vpack.c.b16 %v310, %v310
  %v327 = vpack.c.b16 %v311, %v311
  %v328 = vpack.c.b16 %v312, %v312
  %v329 = vpack.c.b16 %v313, %v313
  %v330 = vpack.c.b16 %v314, %v314
  %v331 = vpack.c.b16 %v315, %v315
  %v332 = vpack.c.b16 %v316, %v316
  %v333 = vpack.c.b16 %v317, %v317
  %v334 = vpack.c.b16 %v318, %v318
  %v335 = vpack.c.b16 %v319, %v319
  %v336 = vpack.c.b16 %v320, %v320
  %v337 = vpack.c.b16 %v321, %v321
  %v610 = vunpack.c.l.b16 %v35
  %v611 = vunpack.c.l.b16 %v36
  %v612 = vunpack.c.l.b16 %v37
  %v613 = vunpack.c.l.b16 %v38
  %v614 = vunpack.c.l.b16 %v39
  %v615 = vunpack.c.l.b16 %v40
  %v616 = vunpack.c.l.b16 %v41
  %v617 = vunpack.c.l.b16 %v42
  %v618 = vunpack.c.l.b16 %v43
  %v619 = vunpack.c.l.b16 %v44
  %v620 = vunpack.c.l.b16 %v45
  %v621 = vunpack.c.l.b16 %v46
  %v622 = vunpack.c.l.b16 %v47
  %v623 = vunpack.c.l.b16 %v48
  %v624 = vunpack.c.l.b16 %v49
  %v625 = vunpack.c.l.b16 %v50
  %v626 = vunpack.c.l.b16 %v51
  %v627 = vunpack.c.l.b16 %v52
  %v628 = vunpack.c.l.b16 %v53
  %v629 = vunpack.c.l.b16 %v54
  %v630 = vunpack.c.l.b16 %v55
  %v631 = vunpack.c.l.b16 %v56
  %v632 = vunpack.c.l.b16 %v57
  %v633 = vunpack.c.l.b16 %v58
  %v634 = vunpack.c.l.b16 %v59
  %v635 = vunpack.c.l.b16 %v60
  %v636 = vunpack.c.l.b16 %v61
  %v637 = vunpack.c.l.b16 %v62
  %v638 = vunpack.c.l.b16 %v63
  %v639 = vunpack.c.l.b16 %v64
  %v640 = vunpack.c.l.b16 %v65
  %v641 = vunpack.c.l.b16 %v66
  %v642 = vunpack.c.l.b16 %v67
  %v643 = vunpack.c.l.b16 %v68
  %v644 = vunpack.c.l.b16 %v69
  %v645 = vunpack.c.l.b16 %v70
  %v646 = vunpack.c.l.b16 %v71
  %v647 = vunpack.c.l.b16 %v72
  %v648 = vunpack.c.l.b16 %v73
  %v649 = vunpack.c.l.b16 %v74
  %v650 = vunpack.c.l.b16 %v75
  %v651 = vunpack.c.l.b16 %v76
  %v652 = vunpack.c.l.b16 %v77
  %v653 = vunpack.c.l.b16 %v78
  %v654 = vunpack.c.l.b16 %v79
  %v655 = vunpack.c.l.b16 %v80
  %v656 = vunpack.c.l.b16 %v81
  %v657 = vunpack.c.l.b16 %v82
  %v658 = vunpack.c.l.b16 %v83
  %v659 = vunpack.c.l.b16 %v84
  %v660 = vunpack.c.l.b16 %v85
  %v661 = vunpack.c.l.b16 %v86
  %v662 = vunpack.c.l.b16 %v87
  %v663 = vunpack.c.l.b16 %v88
  %v664 = vunpack.c.l.b16 %v89
  %v665 = vunpack.c.l.b16 %v90
  %v666 = vunpack.c.l.b16 %v91
  %v667 = vunpack.c.l.b16 %v92
  %v668 = vunpack.c.l.b16 %v93
  %v669 = vunpack.c.l.b16 %v94
  %v670 = vunpack.c.l.b16 %v95
  %v671 = vunpack.c.l.b16 %v96
  %v672 = vunpack.c.l.b16 %v97
  %v673 = vunpack.c.l.b16 %v98
  %v674 = vunpack.c.l.b16 %v99
  %v675 = vunpack.c.l.b16 %v100
  %v676 = vunpack.c.l.b16 %v101
  %v677 = vunpack.c.l.b16 %v102
  %v678 = vunpack.c.l.b16 %v103
  %v679 = vunpack.c.l.b16 %v104
  %v680 = vunpack.c.l.b16 %v105
  %v681 = vunpack.c.l.b16 %v106
  %v682 = vunpack.c.l.b16 %v107
  %v683 = vunpack.c.l.b16 %v108
  %v684 = vunpack.c.l.b16 %v109
  %v685 = vunpack.c.l.b16 %v110
  %v686 = vunpack.c.l.b16 %v111
  %v687 = vunpack.c.l.b16 %v112
  %v688 = vunpack.c.l.b16 %v113
  %v689 = vunpack.c.l.b16 %v114
  %v690 = vunpack.c.l.b16 %v115
  %v691 = vunpack.c.l.b16 %v116
  %v692 = vunpack.c.l.b16 %v117
  %v693 = vunpack.c.l.b16 %v118
  %v694 = vunpack.c.l.b16 %v119
  %v695 = vunpack.c.l.b16 %v120
  %v696 = vunpack.c.l.b16 %v121
  %v697 = vunpack.c.l.b16 %v122
  %v698 = vunpack.c.l.b16 %v123
  %v699 = vunpack.c.l.b16 %v124
  %v700 = vunpack.c.l.b16 %v125
  %v701 = vunpack.c.l.b16 %v126
  %v702 = vunpack.c.l.b16 %v127
  %v703 = vunpack.c.l.b16 %v128
  %v704 = vunpack.c.l.b16 %v129
  %v705 = vunpack.c.l.b16 %v130
  %v706 = vunpack.c.l.b16 %v131
  %v707 = vunpack.c.l.b16 %v132
  %v708 = vunpack.c.l.b16 %v133
  %v709 = vunpack.c.l.b16 %v134
  %v710 = vunpack.c.l.b16 %v135
  %v711 = vunpack.c.l.b16 %v136
  %v712 = vunpack.c.l.b16 %v137
  %v713 = vunpack.c.l.b16 %v138
  %v714 = vunpack.c.l.b16 %v139
  %v715 = vunpack.c.l.b16 %v140
  %v716 = vunpack.c.l.b16 %v141
  %v717 = vunpack.c.l.b16 %v142
  %v718 = vunpack.c.l.b16 %v143
  %v719 = vunpack.c.l.b16 %v144
  %v720 = vunpack.c.l.b16 %v145
  %v721 = vunpack.c.l.b16 %v146
  %v722 = vunpack.c.l.b16 %v147
  %v723 = vunpack.c.l.b16 %v148
  %v724 = vunpack.c.l.b16 %v149
  %v725 = vunpack.c.l.b16 %v150
  %v726 = vunpack.c.l.b16 %v151
  %v727 = vunpack.c.l.b16 %v152
  %v728 = vunpack.c.l.b16 %v153
  %v729 = vunpack.c.l.b16 %v154
  %v730 = vunpack.c.l.b16 %v155
  %v731 = vunpack.c.l.b16 %v156
  %v732 = vunpack.c.l.b16 %v157
  %v733 = vunpack.c.l.b16 %v158
  %v734 = vunpack.c.l.b16 %v159
  %v735 = vunpack.c.l.b16 %v160
  %v736 = vunpack.c.l.b16 %v161
  %v737 = vunpack.c.l.b16 %v162
  %v738 = vunpack.c.l.b16 %v163
  %v739 = vunpack.c.l.b16 %v164
  %v740 = vunpack.c.l.b16 %v165
  %v741 = vunpack.c.l.b16 %v166
  %v742 = vunpack.c.l.b16 %v167
  %v743 = vunpack.c.l.b16 %v168
  %v744 = vunpack.c.l.b16 %v169
  %v745 = vunpack.c.l.b16 %v170
  %v746 = vunpack.c.l.b16 %v171
  %v747 = vunpack.c.l.b16 %v172
  %v748 = vunpack.c.l.b16 %v173
  %v749 = vunpack.c.l.b16 %v174
  %v750 = vunpack.c.l.b16 %v175
  %v751 = vunpack.c.l.b16 %v176
  %v752 = vunpack.c.l.b16 %v177
  %v753 = vunpack.c.l.b16 %v178
  %v754 = vunpack.c.l.b16 %v179
  %v755 = vunpack.c.l.b16 %v180
  %v756 = vunpack.c.l.b16 %v181
  %v757 = vunpack.c.l.b16 %v182
  %v758 = vunpack.c.l.b16 %v183
  %v759 = vunpack.c.l.b16 %v184
  %v760 = vunpack.c.l.b16 %v185
  %v761 = vunpack.c.l.b16 %v186
  %v762 = vunpack.c.l.b16 %v187
  %v763 = vunpack.c.l.b16 %v188
  %v764 = vunpack.c.l.b16 %v189
  %v765 = vunpack.c.l.b16 %v190
  %v766 = vunpack.c.l.b16 %v191
  %v767 = vunpack.c.l.b16 %v192
  %v768 = vunpack.c.l.b16 %v193
  %v769 = vunpack.c.l.b16 %v194
  %v770 = vunpack.c.l.b16 %v195
  %v771 = vunpack.c.l.b16 %v196
  %v772 = vunpack.c.l.b16 %v197
  %v773 = vunpack.c.l.b16 %v198
  %v774 = vunpack.c.l.b16 %v199
  %v775 = vunpack.c.l.b16 %v200
  %v776 = vunpack.c.l.b16 %v201
  %v777 = vunpack.c.l.b16 %v202
  %v778 = vunpack.c.l.b16 %v203
  %v779 = vunpack.c.l.b16 %v204
  %v780 = vunpack.c.l.b16 %v205
  %v781 = vunpack.c.l.b16 %v206
  %v782 = vunpack.c.l.b16 %v207
  %v783 = vunpack.c.l.b16 %v208
  %v784 = vunpack.c.l.b16 %v209
  %v785 = vunpack.c.l.b16 %v210
  %v786 = vunpack.c.l.b16 %v211
  %v787 = vunpack.c.l.b16 %v212
  %v788 = vunpack.c.l.b16 %v213
  %v789 = vunpack.c.l.b16 %v214
  %v790 = vunpack.c.l.b16 %v215
  %v791 = vunpack.c.l.b16 %v216
  %v792 = vunpack.c.l.b16 %v217
  %v793 = vunpack.c.l.b16 %v218
  %v794 = vunpack.c.l.b16 %v219
  %v795 = vunpack.c.l.b16 %v220
  %v796 = vunpack.c.l.b16 %v221
  %v797 = vunpack.c.l.b16 %v222
  %v798 = vunpack.c.l.b16 %v223
  %v799 = vunpack.c.l.b16 %v224
  %v800 = vunpack.c.l.b16 %v225
  %v801 = vunpack.c.l.b16 %v226
  %v802 = vunpack.c.l.b16 %v227
  %v803 = vunpack.c.l.b16 %v228
  %v804 = vunpack.c.l.b16 %v229
  %v805 = vunpack.c.l.b16 %v230
  %v806 = vunpack.c.l.b16 %v231
  %v807 = vunpack.c.l.b16 %v232
  %v808 = vunpack.c.l.b16 %v233
  %v809 = vunpack.c.l.b16 %v234
  %v810 = vunpack.c.l.b16 %v235
  %v811 = vunpack.c.l.b16 %v236
  %v812 = vunpack.c.l.b16 %v237
  %v813 = vunpack.c.l.b16 %v238
  %v814 = vunpack.c.l.b16 %v239
  %v815 = vunpack.c.l.b16 %v240
  %v816 = vunpack.c.l.b16 %v241
  %v817 = vunpack.c.l.b16 %v242
  %v818 = vunpack.c.l.b16 %v243
  %v819 = vunpack.c.l.b16 %v244
  %v820 = vunpack.c.l.b16 %v245
  %v821 = vunpack.c.l.b16 %v246
  %v822 = vunpack.c.l.b16 %v247
  %v823 = vunpack.c.l.b16 %v248
  %v824 = vunpack.c.l.b16 %v249
  %v825 = vunpack.c.l.b16 %v250
  %v826 = vunpack.c.l.b16 %v251
  %v827 = vunpack.c.l.b16 %v252
  %v828 = vunpack.c.l.b16 %v253
  %v829 = vunpack.c.l.b16 %v254
  %v830 = vunpack.c.l.b16 %v255
  %v831 = vunpack.c.l.b16 %v256
  %v832 = vunpack.c.l.b16 %v257
  %v833 = vunpack.c.l.b16 %v258
  %v834 = vunpack.c.l.b16 %v259
  %v835 = vunpack.c.l.b16 %v260
  %v836 = vunpack.c.l.b16 %v261
  %v837 = vunpack.c.l.b16 %v262
  %v838 = vunpack.c.l.b16 %v263
  %v839 = vunpack.c.l.b16 %v264
  %v840 = vunpack.c.l.b16 %v265
  %v841 = vunpack.c.l.b16 %v266
  %v842 = vunpack.c.l.b16 %v267
  %v843 = vunpack.c.l.b16 %v268
  %v844 = vunpack.c.l.b16 %v269
  %v845 = vunpack.c.l.b16 %v270
  %v846 = vunpack.c.l.b16 %v271
  %v847 = vunpack.c.l.b16 %v272
  %v848 = vunpack.c.l.b16 %v273
  %v849 = vunpack.c.l.b16 %v274
  %v850 = vunpack.c.l.b16 %v275
  %v851 = vunpack.c.l.b16 %v276
  %v852 = vunpack.c.l.b16 %v277
  %v853 = vunpack.c.l.b16 %v278
  %v854 = vunpack.c.l.b16 %v279
  %v855 = vunpack.c.l.b16 %v280
  %v856 = vunpack.c.l.b16 %v281
  %v857 = vunpack.c.l.b16 %v282
  %v858 = vunpack.c.l.b16 %v283
  %v859 = vunpack.c.l.b16 %v284
  %v860 = vunpack.c.l.b16 %v285
  %v861 = vunpack.c.l.b16 %v286
  %v862 = vunpack.c.l.b16 %v287
  %v863 = vunpack.c.l.b16 %v288
  %v864 = vunpack.c.l.b16 %v289
  %v865 = vunpack.c.l.b16 %v290
  %v866 = vpack.c.b16 %v611, %v610
  %v867 = vpack.c.b16 %v613, %v612
  %v868 = vpack.c.b16 %v615, %v614
  %v869 = vpack.c.b16 %v617, %v616
  %v870 = vpack.c.b16 %v619, %v618
  %v871 = vpack.c.b16 %v621, %v620
  %v872 = vpack.c.b16 %v623, %v622
  %v873 = vpack.c.b16 %v625, %v624
  %v874 = vpack.c.b16 %v627, %v626
  %v875 = vpack.c.b16 %v629, %v628
  %v876 = vpack.c.b16 %v631, %v630
  %v877 = vpack.c.b16 %v633, %v632
  %v878 = vpack.c.b16 %v635, %v634
  %v879 = vpack.c.b16 %v637, %v636
  %v880 = vpack.c.b16 %v639, %v638
  %v881 = vpack.c.b16 %v641, %v640
  %v882 = vpack.c.b16 %v643, %v642
  %v883 = vpack.c.b16 %v645, %v644
  %v884 = vpack.c.b16 %v647, %v646
  %v885 = vpack.c.b16 %v649, %v648
  %v886 = vpack.c.b16 %v651, %v650
  %v887 = vpack.c.b16 %v653, %v652
  %v888 = vpack.c.b16 %v655, %v654
  %v889 = vpack.c.b16 %v657, %v656
  %v890 = vpack.c.b16 %v659, %v658
  %v891 = vpack.c.b16 %v661, %v660
  %v892 = vpack.c.b16 %v663, %v662
  %v893 = vpack.c.b16 %v665, %v664
  %v894 = vpack.c.b16 %v667, %v666
  %v895 = vpack.c.b16 %v669, %v668
  %v896 = vpack.c.b16 %v671, %v670
  %v897 = vpack.c.b16 %v673, %v672
  %v898 = vpack.c.b16 %v675, %v674
  %v899 = vpack.c.b16 %v677, %v676
  %v900 = vpack.c.b16 %v679, %v678
  %v901 = vpack.c.b16 %v681, %v680
  %v902 = vpack.c.b16 %v683, %v682
  %v903 = vpack.c.b16 %v685, %v684
  %v904 = vpack.c.b16 %v687, %v686
  %v905 = vpack.c.b16 %v689, %v688
  %v906 = vpack.c.b16 %v691, %v690
  %v907 = vpack.c.b16 %v693, %v692
  %v908 = vpack.c.b16 %v695, %v694
  %v909 = vpack.c.b16 %v697, %v696
  %v910 = vpack.c.b16 %v699, %v698
  %v911 = vpack.c.b16 %v701, %v700
  %v912 = vpack.c.b16 %v703, %v702
  %v913 = vpack.c.b16 %v705, %v704
  %v914 = vpack.c.b16 %v707, %v706
  %v915 = vpack.c.b16 %v709, %v708
  %v916 = vpack.c.b16 %v711, %v710
  %v917 = vpack.c.b16 %v713, %v712
  %v918 = vpack.c.b16 %v715, %v714
  %v919 = vpack.c.b16 %v717, %v716
  %v920 = vpack.c.b16 %v719, %v718
  %v921 = vpack.c.b16 %v721, %v720
  %v922 = vpack.c.b16 %v723, %v722
  %v923 = vpack.c.b16 %v725, %v724
  %v924 = vpack.c.b16 %v727, %v726
  %v925 = vpack.c.b16 %v729, %v728
  %v926 = vpack.c.b16 %v731, %v730
  %v927 = vpack.c.b16 %v733, %v732
  %v928 = vpack.c.b16 %v735, %v734
  %v929 = vpack.c.b16 %v737, %v736
  %v930 = vpack.c.b16 %v739, %v738
  %v931 = vpack.c.b16 %v741, %v740
  %v932 = vpack.c.b16 %v743, %v742
  %v933 = vpack.c.b16 %v745, %v744
  %v934 = vpack.c.b16 %v747, %v746
  %v935 = vpack.c.b16 %v749, %v748
  %v936 = vpack.c.b16 %v751, %v750
  %v937 = vpack.c.b16 %v753, %v752
  %v938 = vpack.c.b16 %v755, %v754
  %v939 = vpack.c.b16 %v757, %v756
  %v940 = vpack.c.b16 %v759, %v758
  %v941 = vpack.c.b16 %v761, %v760
  %v942 = vpack.c.b16 %v763, %v762
  %v943 = vpack.c.b16 %v765, %v764
  %v944 = vpack.c.b16 %v767, %v766
  %v945 = vpack.c.b16 %v769, %v768
  %v946 = vpack.c.b16 %v771, %v770
  %v947 = vpack.c.b16 %v773, %v772
  %v948 = vpack.c.b16 %v775, %v774
  %v949 = vpack.c.b16 %v777, %v776
  %v950 = vpack.c.b16 %v779, %v778
  %v951 = vpack.c.b16 %v781, %v780
  %v952 = vpack.c.b16 %v783, %v782
  %v953 = vpack.c.b16 %v785, %v784
  %v954 = vpack.c.b16 %v787, %v786
  %v955 = vpack.c.b16 %v789, %v788
  %v956 = vpack.c.b16 %v791, %v790
  %v957 = vpack.c.b16 %v793, %v792
  %v958 = vpack.c.b16 %v795, %v794
  %v959 = vpack.c.b16 %v797, %v796
  %v960 = vpack.c.b16 %v799, %v798
  %v961 = vpack.c.b16 %v801, %v800
  %v962 = vpack.c.b16 %v803, %v802
  %v963 = vpack.c.b16 %v805, %v804
  %v964 = vpack.c.b16 %v807, %v806
  %v965 = vpack.c.b16 %v809, %v808
  %v966 = vpack.c.b16 %v811, %v810
  %v967 = vpack.c.b16 %v813, %v812
  %v968 = vpack.c.b16 %v815, %v814
  %v969 = vpack.c.b16 %v817, %v816
  %v970 = vpack.c.b16 %v819, %v818
  %v971 = vpack.c.b16 %v821, %v820
  %v972 = vpack.c.b16 %v823, %v822
  %v973 = vpack.c.b16 %v825, %v824
  %v974 = vpack.c.b16 %v827, %v826
  %v975 = vpack.c.b16 %v829, %v828
  %v976 = vpack.c.b16 %v831, %v830
  %v977 = vpack.c.b16 %v833, %v832
  %v978 = vpack.c.b16 %v835, %v834
  %v979 = vpack.c.b16 %v837, %v836
  %v980 = vpack.c.b16 %v839, %v838
  %v981 = vpack.c.b16 %v841, %v840
  %v982 = vpack.c.b16 %v843, %v842
  %v983 = vpack.c.b16 %v845, %v844
  %v984 = vpack.c.b16 %v847, %v846
  %v985 = vpack.c.b16 %v849, %v848
  %v986 = vpack.c.b16 %v851, %v850
  %v987 = vpack.c.b16 %v853, %v852
  %v988 = vpack.c.b16 %v855, %v854
  %v989 = vpack.c.b16 %v857, %v856
  %v990 = vpack.c.b16 %v859, %v858
  %v991 = vpack.c.b16 %v861, %v860
  %v992 = vpack.c.b16 %v863, %v862
  %v993 = vpack.c.b16 %v865, %v864
  %1122 = vmatprep.subr.bf16.mxu0 0
  %1123 = vmatpush1.bf16.msra.mxu0 %v866
  %1124 = vmatprep.subr.bf16.mxu0 0
  %1125 = vmatpush1.bf16.msra.mxu0 %v867
  %1126 = vmatprep.subr.bf16.mxu0 0
  %1127 = vmatpush1.bf16.msra.mxu0 %v868
  %1128 = vmatprep.subr.bf16.mxu0 0
  %1129 = vmatpush1.bf16.msra.mxu0 %v869
  %1130 = vmatprep.subr.bf16.mxu0 0
  %1131 = vmatpush1.bf16.msra.mxu0 %v870
  %1132 = vmatprep.subr.bf16.mxu0 0
  %1133 = vmatpush1.bf16.msra.mxu0 %v871
  %1134 = vmatprep.subr.bf16.mxu0 0
  %1135 = vmatpush1.bf16.msra.mxu0 %v872
  %1136 = vmatprep.subr.bf16.mxu0 0
  %1137 = vmatpush1.bf16.msra.mxu0 %v873
  %1138 = vmatprep.subr.bf16.mxu0 0
  %1139 = vmatpush1.bf16.msra.mxu0 %v874
  %1140 = vmatprep.subr.bf16.mxu0 0
  %1141 = vmatpush1.bf16.msra.mxu0 %v875
  %1142 = vmatprep.subr.bf16.mxu0 0
  %1143 = vmatpush1.bf16.msra.mxu0 %v876
  %1144 = vmatprep.subr.bf16.mxu0 0
  %1145 = vmatpush1.bf16.msra.mxu0 %v877
  %1146 = vmatprep.subr.bf16.mxu0 0
  %1147 = vmatpush1.bf16.msra.mxu0 %v878
  %1148 = vmatprep.subr.bf16.mxu0 0
  %1149 = vmatpush1.bf16.msra.mxu0 %v879
  %1150 = vmatprep.subr.bf16.mxu0 0
  %1151 = vmatpush1.bf16.msra.mxu0 %v880
  %1152 = vmatprep.subr.bf16.mxu0 0
  %1153 = vmatpush1.bf16.msra.mxu0 %v881
  %1154 = vmatprep.mubr.bf16.mxu0 %v323
  %1155 = vmatmul.mubr.bf16.gmra.mrb[0].mxu0 %v322
  %v1156 = vpop.f32.mrb[0].mxu0
  %v1157 = vadd.f32 %v296, %v1156
  %v1158 = vpop.f32.mrb[0].mxu0
  %v1159 = vpop.f32.mrb[0].mxu0
  %v1160 = vpop.f32.mrb[0].mxu0
  %1161 = vdwg.mxu0
  %1162 = vmatprep.subr.bf16.mxu0 0
  %1163 = vmatpush1.bf16.msra.mxu0 %v882
  %1164 = vmatprep.subr.bf16.mxu0 0
  %1165 = vmatpush1.bf16.msra.mxu0 %v883
  %1166 = vmatprep.subr.bf16.mxu0 0
  %1167 = vmatpush1.bf16.msra.mxu0 %v884
  %1168 = vmatprep.subr.bf16.mxu0 0
  %1169 = vmatpush1.bf16.msra.mxu0 %v885
  %1170 = vmatprep.subr.bf16.mxu0 0
  %1171 = vmatpush1.bf16.msra.mxu0 %v886
  %1172 = vmatprep.subr.bf16.mxu0 0
  %1173 = vmatpush1.bf16.msra.mxu0 %v887
  %1174 = vmatprep.subr.bf16.mxu0 0
  %1175 = vmatpush1.bf16.msra.mxu0 %v888
  %1176 = vmatprep.subr.bf16.mxu0 0
  %1177 = vmatpush1.bf16.msra.mxu0 %v889
  %1178 = vmatprep.subr.bf16.mxu0 0
  %1179 = vmatpush1.bf16.msra.mxu0 %v890
  %1180 = vmatprep.subr.bf16.mxu0 0
  %1181 = vmatpush1.bf16.msra.mxu0 %v891
  %1182 = vmatprep.subr.bf16.mxu0 0
  %1183 = vmatpush1.bf16.msra.mxu0 %v892
  %1184 = vmatprep.subr.bf16.mxu0 0
  %1185 = vmatpush1.bf16.msra.mxu0 %v893
  %1186 = vmatprep.subr.bf16.mxu0 0
  %1187 = vmatpush1.bf16.msra.mxu0 %v894
  %1188 = vmatprep.subr.bf16.mxu0 0
  %1189 = vmatpush1.bf16.msra.mxu0 %v895
  %1190 = vmatprep.subr.bf16.mxu0 0
  %1191 = vmatpush1.bf16.msra.mxu0 %v896
  %1192 = vmatprep.subr.bf16.mxu0 0
  %1193 = vmatpush1.bf16.msra.mxu0 %v897
  %1194 = vmatprep.mubr.bf16.mxu0 %v325
  %1195 = vmatmul.mubr.bf16.gmra.mrb[0].mxu0 %v324
  %v1196 = vpop.f32.mrb[0].mxu0
  %v1197 = vadd.f32 %v1157, %v1196
  %v1198 = vpop.f32.mrb[0].mxu0
  %v1199 = vpop.f32.mrb[0].mxu0
  %v1200 = vpop.f32.mrb[0].mxu0
  %1201 = vdwg.mxu0
  %1202 = vmatprep.subr.bf16.mxu0 0
  %1203 = vmatpush1.bf16.msra.mxu0 %v898
  %1204 = vmatprep.subr.bf16.mxu0 0
  %1205 = vmatpush1.bf16.msra.mxu0 %v899
  %1206 = vmatprep.subr.bf16.mxu0 0
  %1207 = vmatpush1.bf16.msra.mxu0 %v900
  %1208 = vmatprep.subr.bf16.mxu0 0
  %1209 = vmatpush1.bf16.msra.mxu0 %v901
  %1210 = vmatprep.subr.bf16.mxu0 0
  %1211 = vmatpush1.bf16.msra.mxu0 %v902
  %1212 = vmatprep.subr.bf16.mxu0 0
  %1213 = vmatpush1.bf16.msra.mxu0 %v903
  %1214 = vmatprep.subr.bf16.mxu0 0
  %1215 = vmatpush1.bf16.msra.mxu0 %v904
  %1216 = vmatprep.subr.bf16.mxu0 0
  %1217 = vmatpush1.bf16.msra.mxu0 %v905
  %1218 = vmatprep.subr.bf16.mxu0 0
  %1219 = vmatpush1.bf16.msra.mxu0 %v906
  %1220 = vmatprep.subr.bf16.mxu0 0
  %1221 = vmatpush1.bf16.msra.mxu0 %v907
  %1222 = vmatprep.subr.bf16.mxu0 0
  %1223 = vmatpush1.bf16.msra.mxu0 %v908
  %1224 = vmatprep.subr.bf16.mxu0 0
  %1225 = vmatpush1.bf16.msra.mxu0 %v909
  %1226 = vmatprep.subr.bf16.mxu0 0
  %1227 = vmatpush1.bf16.msra.mxu0 %v910
  %1228 = vmatprep.subr.bf16.mxu0 0
  %1229 = vmatpush1.bf16.msra.mxu0 %v911
  %1230 = vmatprep.subr.bf16.mxu0 0
  %1231 = vmatpush1.bf16.msra.mxu0 %v912
  %1232 = vmatprep.subr.bf16.mxu0 0
  %1233 = vmatpush1.bf16.msra.mxu0 %v913
  %1234 = vmatprep.mubr.bf16.mxu0 %v327
  %1235 = vmatmul.mubr.bf16.gmra.mrb[0].mxu0 %v326
  %v1236 = vpop.f32.mrb[0].mxu0
  %v1237 = vadd.f32 %v1197, %v1236
  %v1238 = vpop.f32.mrb[0].mxu0
  %v1239 = vpop.f32.mrb[0].mxu0
  %v1240 = vpop.f32.mrb[0].mxu0
  %1241 = vdwg.mxu0
  %1242 = vmatprep.subr.bf16.mxu0 0
  %1243 = vmatpush1.bf16.msra.mxu0 %v914
  %1244 = vmatprep.subr.bf16.mxu0 0
  %1245 = vmatpush1.bf16.msra.mxu0 %v915
  %1246 = vmatprep.subr.bf16.mxu0 0
  %1247 = vmatpush1.bf16.msra.mxu0 %v916
  %1248 = vmatprep.subr.bf16.mxu0 0
  %1249 = vmatpush1.bf16.msra.mxu0 %v917
  %1250 = vmatprep.subr.bf16.mxu0 0
  %1251 = vmatpush1.bf16.msra.mxu0 %v918
  %1252 = vmatprep.subr.bf16.mxu0 0
  %1253 = vmatpush1.bf16.msra.mxu0 %v919
  %1254 = vmatprep.subr.bf16.mxu0 0
  %1255 = vmatpush1.bf16.msra.mxu0 %v920
  %1256 = vmatprep.subr.bf16.mxu0 0
  %1257 = vmatpush1.bf16.msra.mxu0 %v921
  %1258 = vmatprep.subr.bf16.mxu0 0
  %1259 = vmatpush1.bf16.msra.mxu0 %v922
  %1260 = vmatprep.subr.bf16.mxu0 0
  %1261 = vmatpush1.bf16.msra.mxu0 %v923
  %1262 = vmatprep.subr.bf16.mxu0 0
  %1263 = vmatpush1.bf16.msra.mxu0 %v924
  %1264 = vmatprep.subr.bf16.mxu0 0
  %1265 = vmatpush1.bf16.msra.mxu0 %v925
  %1266 = vmatprep.subr.bf16.mxu0 0
  %1267 = vmatpush1.bf16.msra.mxu0 %v926
  %1268 = vmatprep.subr.bf16.mxu0 0
  %1269 = vmatpush1.bf16.msra.mxu0 %v927
  %1270 = vmatprep.subr.bf16.mxu0 0
  %1271 = vmatpush1.bf16.msra.mxu0 %v928
  %1272 = vmatprep.subr.bf16.mxu0 0
  %1273 = vmatpush1.bf16.msra.mxu0 %v929
  %1274 = vmatprep.mubr.bf16.mxu0 %v329
  %1275 = vmatmul.mubr.bf16.gmra.mrb[0].mxu0 %v328
  %v1276 = vpop.f32.mrb[0].mxu0
  %v1277 = vadd.f32 %v1237, %v1276
  %v1278 = vpop.f32.mrb[0].mxu0
  %v1279 = vpop.f32.mrb[0].mxu0
  %v1280 = vpop.f32.mrb[0].mxu0
  %1281 = vdwg.mxu0
  %1282 = vmatprep.subr.bf16.mxu0 0
  %1283 = vmatpush1.bf16.msra.mxu0 %v930
  %1284 = vmatprep.subr.bf16.mxu0 0
  %1285 = vmatpush1.bf16.msra.mxu0 %v931
  %1286 = vmatprep.subr.bf16.mxu0 0
  %1287 = vmatpush1.bf16.msra.mxu0 %v932
  %1288 = vmatprep.subr.bf16.mxu0 0
  %1289 = vmatpush1.bf16.msra.mxu0 %v933
  %1290 = vmatprep.subr.bf16.mxu0 0
  %1291 = vmatpush1.bf16.msra.mxu0 %v934
  %1292 = vmatprep.subr.bf16.mxu0 0
  %1293 = vmatpush1.bf16.msra.mxu0 %v935
  %1294 = vmatprep.subr.bf16.mxu0 0
  %1295 = vmatpush1.bf16.msra.mxu0 %v936
  %1296 = vmatprep.subr.bf16.mxu0 0
  %1297 = vmatpush1.bf16.msra.mxu0 %v937
  %1298 = vmatprep.subr.bf16.mxu0 0
  %1299 = vmatpush1.bf16.msra.mxu0 %v938
  %1300 = vmatprep.subr.bf16.mxu0 0
  %1301 = vmatpush1.bf16.msra.mxu0 %v939
  %1302 = vmatprep.subr.bf16.mxu0 0
  %1303 = vmatpush1.bf16.msra.mxu0 %v940
  %1304 = vmatprep.subr.bf16.mxu0 0
  %1305 = vmatpush1.bf16.msra.mxu0 %v941
  %1306 = vmatprep.subr.bf16.mxu0 0
  %1307 = vmatpush1.bf16.msra.mxu0 %v942
  %1308 = vmatprep.subr.bf16.mxu0 0
  %1309 = vmatpush1.bf16.msra.mxu0 %v943
  %1310 = vmatprep.subr.bf16.mxu0 0
  %1311 = vmatpush1.bf16.msra.mxu0 %v944
  %1312 = vmatprep.subr.bf16.mxu0 0
  %1313 = vmatpush1.bf16.msra.mxu0 %v945
  %1314 = vmatprep.mubr.bf16.mxu0 %v331
  %1315 = vmatmul.mubr.bf16.gmra.mrb[0].mxu0 %v330
  %v1316 = vpop.f32.mrb[0].mxu0
  %v1317 = vadd.f32 %v1277, %v1316
  %v1318 = vpop.f32.mrb[0].mxu0
  %v1319 = vpop.f32.mrb[0].mxu0
  %v1320 = vpop.f32.mrb[0].mxu0
  %1321 = vdwg.mxu0
  %1322 = vmatprep.subr.bf16.mxu0 0
  %1323 = vmatpush1.bf16.msra.mxu0 %v946
  %1324 = vmatprep.subr.bf16.mxu0 0
  %1325 = vmatpush1.bf16.msra.mxu0 %v947
  %1326 = vmatprep.subr.bf16.mxu0 0
  %1327 = vmatpush1.bf16.msra.mxu0 %v948
  %1328 = vmatprep.subr.bf16.mxu0 0
  %1329 = vmatpush1.bf16.msra.mxu0 %v949
  %1330 = vmatprep.subr.bf16.mxu0 0
  %1331 = vmatpush1.bf16.msra.mxu0 %v950
  %1332 = vmatprep.subr.bf16.mxu0 0
  %1333 = vmatpush1.bf16.msra.mxu0 %v951
  %1334 = vmatprep.subr.bf16.mxu0 0
  %1335 = vmatpush1.bf16.msra.mxu0 %v952
  %1336 = vmatprep.subr.bf16.mxu0 0
  %1337 = vmatpush1.bf16.msra.mxu0 %v953
  %1338 = vmatprep.subr.bf16.mxu0 0
  %1339 = vmatpush1.bf16.msra.mxu0 %v954
  %1340 = vmatprep.subr.bf16.mxu0 0
  %1341 = vmatpush1.bf16.msra.mxu0 %v955
  %1342 = vmatprep.subr.bf16.mxu0 0
  %1343 = vmatpush1.bf16.msra.mxu0 %v956
  %1344 = vmatprep.subr.bf16.mxu0 0
  %1345 = vmatpush1.bf16.msra.mxu0 %v957
  %1346 = vmatprep.subr.bf16.mxu0 0
  %1347 = vmatpush1.bf16.msra.mxu0 %v958
  %1348 = vmatprep.subr.bf16.mxu0 0
  %1349 = vmatpush1.bf16.msra.mxu0 %v959
  %1350 = vmatprep.subr.bf16.mxu0 0
  %1351 = vmatpush1.bf16.msra.mxu0 %v960
  %1352 = vmatprep.subr.bf16.mxu0 0
  %1353 = vmatpush1.bf16.msra.mxu0 %v961
  %1354 = vmatprep.mubr.bf16.mxu0 %v333
  %1355 = vmatmul.mubr.bf16.gmra.mrb[0].mxu0 %v332
  %v1356 = vpop.f32.mrb[0].mxu0
  %v1357 = vadd.f32 %v1317, %v1356
  %v1358 = vpop.f32.mrb[0].mxu0
  %v1359 = vpop.f32.mrb[0].mxu0
  %v1360 = vpop.f32.mrb[0].mxu0
  %1361 = vdwg.mxu0
  %1362 = vmatprep.subr.bf16.mxu0 0
  %1363 = vmatpush1.bf16.msra.mxu0 %v962
  %1364 = vmatprep.subr.bf16.mxu0 0
  %1365 = vmatpush1.bf16.msra.mxu0 %v963
  %1366 = vmatprep.subr.bf16.mxu0 0
  %1367 = vmatpush1.bf16.msra.mxu0 %v964
  %1368 = vmatprep.subr.bf16.mxu0 0
  %1369 = vmatpush1.bf16.msra.mxu0 %v965
  %1370 = vmatprep.subr.bf16.mxu0 0
  %1371 = vmatpush1.bf16.msra.mxu0 %v966
  %1372 = vmatprep.subr.bf16.mxu0 0
  %1373 = vmatpush1.bf16.msra.mxu0 %v967
  %1374 = vmatprep.subr.bf16.mxu0 0
  %1375 = vmatpush1.bf16.msra.mxu0 %v968
  %1376 = vmatprep.subr.bf16.mxu0 0
  %1377 = vmatpush1.bf16.msra.mxu0 %v969
  %1378 = vmatprep.subr.bf16.mxu0 0
  %1379 = vmatpush1.bf16.msra.mxu0 %v970
  %1380 = vmatprep.subr.bf16.mxu0 0
  %1381 = vmatpush1.bf16.msra.mxu0 %v971
  %1382 = vmatprep.subr.bf16.mxu0 0
  %1383 = vmatpush1.bf16.msra.mxu0 %v972
  %1384 = vmatprep.subr.bf16.mxu0 0
  %1385 = vmatpush1.bf16.msra.mxu0 %v973
  %1386 = vmatprep.subr.bf16.mxu0 0
  %1387 = vmatpush1.bf16.msra.mxu0 %v974
  %1388 = vmatprep.subr.bf16.mxu0 0
  %1389 = vmatpush1.bf16.msra.mxu0 %v975
  %1390 = vmatprep.subr.bf16.mxu0 0
  %1391 = vmatpush1.bf16.msra.mxu0 %v976
  %1392 = vmatprep.subr.bf16.mxu0 0
  %1393 = vmatpush1.bf16.msra.mxu0 %v977
  %1394 = vmatprep.mubr.bf16.mxu0 %v335
  %1395 = vmatmul.mubr.bf16.gmra.mrb[0].mxu0 %v334
  %v1396 = vpop.f32.mrb[0].mxu0
  %v1397 = vadd.f32 %v1357, %v1396
  %v1398 = vpop.f32.mrb[0].mxu0
  %v1399 = vpop.f32.mrb[0].mxu0
  %v1400 = vpop.f32.mrb[0].mxu0
  %1401 = vdwg.mxu0
  %1402 = vmatprep.subr.bf16.mxu0 0
  %1403 = vmatpush1.bf16.msra.mxu0 %v978
  %1404 = vmatprep.subr.bf16.mxu0 0
  %1405 = vmatpush1.bf16.msra.mxu0 %v979
  %1406 = vmatprep.subr.bf16.mxu0 0
  %1407 = vmatpush1.bf16.msra.mxu0 %v980
  %1408 = vmatprep.subr.bf16.mxu0 0
  %1409 = vmatpush1.bf16.msra.mxu0 %v981
  %1410 = vmatprep.subr.bf16.mxu0 0
  %1411 = vmatpush1.bf16.msra.mxu0 %v982
  %1412 = vmatprep.subr.bf16.mxu0 0
  %1413 = vmatpush1.bf16.msra.mxu0 %v983
  %1414 = vmatprep.subr.bf16.mxu0 0
  %1415 = vmatpush1.bf16.msra.mxu0 %v984
  %1416 = vmatprep.subr.bf16.mxu0 0
  %1417 = vmatpush1.bf16.msra.mxu0 %v985
  %1418 = vmatprep.subr.bf16.mxu0 0
  %1419 = vmatpush1.bf16.msra.mxu0 %v986
  %1420 = vmatprep.subr.bf16.mxu0 0
  %1421 = vmatpush1.bf16.msra.mxu0 %v987
  %1422 = vmatprep.subr.bf16.mxu0 0
  %1423 = vmatpush1.bf16.msra.mxu0 %v988
  %1424 = vmatprep.subr.bf16.mxu0 0
  %1425 = vmatpush1.bf16.msra.mxu0 %v989
  %1426 = vmatprep.subr.bf16.mxu0 0
  %1427 = vmatpush1.bf16.msra.mxu0 %v990
  %1428 = vmatprep.subr.bf16.mxu0 0
  %1429 = vmatpush1.bf16.msra.mxu0 %v991
  %1430 = vmatprep.subr.bf16.mxu0 0
  %1431 = vmatpush1.bf16.msra.mxu0 %v992
  %1432 = vmatprep.subr.bf16.mxu0 0
  %1433 = vmatpush1.bf16.msra.mxu0 %v993
  %1434 = vmatprep.mubr.bf16.mxu0 %v337
  %1435 = vmatmul.mubr.bf16.gmra.mrb[0].mxu0 %v336
  %v1436 = vpop.f32.mrb[0].mxu0
  %v1437 = vadd.f32 %v1397, %v1436
  %v1438 = vpop.f32.mrb[0].mxu0
  %v1439 = vpop.f32.mrb[0].mxu0
  %v1440 = vpop.f32.mrb[0].mxu0
  %1441 = vdwg.mxu0
  %v1442 = vmax.f32 %v1437, 0.0
  %v1443 = vpack.c.bf16 %v1442, %v1442
  %v1444 = vld [vmem:[%s3] sm:$0xf]
  %v1445 = vld [vmem:[%s3 + $0x4] sm:$0xf]
  %v1446 = vld [vmem:[%s3 + $0x8] sm:$0xf]
  %v1447 = vld [vmem:[%s3 + $0xc] sm:$0xf]
  %v1448 = vld [vmem:[%s3 + $0x10] sm:$0xf]
  %v1449 = vld [vmem:[%s3 + $0x14] sm:$0xf]
  %v1450 = vld [vmem:[%s3 + $0x18] sm:$0xf]
  %v1451 = vld [vmem:[%s3 + $0x1c] sm:$0xf]
  %v1452 = vld [vmem:[%s3 + $0x20] sm:$0xf]
  %v1453 = vld [vmem:[%s3 + $0x24] sm:$0xf]
  %v1454 = vld [vmem:[%s3 + $0x28] sm:$0xf]
  %v1455 = vld [vmem:[%s3 + $0x2c] sm:$0xf]
  %v1456 = vld [vmem:[%s3 + $0x30] sm:$0xf]
  %v1457 = vld [vmem:[%s3 + $0x34] sm:$0xf]
  %v1458 = vld [vmem:[%s3 + $0x38] sm:$0xf]
  %v1459 = vld [vmem:[%s3 + $0x3c] sm:$0xf]
  %v1460 = vld [vmem:[%s4] sm:$0x1]
  %v1462 = vlaneseq
  %v1463 = vshrl.u32 %v1462, 7
  %v1464 = vsub.s32 0, %v1463
  %v1465 = vrot.slane %v1460, %v1464
  %v1483 = vunpack.c.l.b16 %v1444
  %v1484 = vunpack.c.l.b16 %v1445
  %v1485 = vunpack.c.l.b16 %v1446
  %v1486 = vunpack.c.l.b16 %v1447
  %v1487 = vunpack.c.l.b16 %v1448
  %v1488 = vunpack.c.l.b16 %v1449
  %v1489 = vunpack.c.l.b16 %v1450
  %v1490 = vunpack.c.l.b16 %v1451
  %v1491 = vunpack.c.l.b16 %v1452
  %v1492 = vunpack.c.l.b16 %v1453
  %v1493 = vunpack.c.l.b16 %v1454
  %v1494 = vunpack.c.l.b16 %v1455
  %v1495 = vunpack.c.l.b16 %v1456
  %v1496 = vunpack.c.l.b16 %v1457
  %v1497 = vunpack.c.l.b16 %v1458
  %v1498 = vunpack.c.l.b16 %v1459
  %v1499 = vpack.c.b16 %v1484, %v1483
  %v1500 = vpack.c.b16 %v1486, %v1485
  %v1501 = vpack.c.b16 %v1488, %v1487
  %v1502 = vpack.c.b16 %v1490, %v1489
  %v1503 = vpack.c.b16 %v1492, %v1491
  %v1504 = vpack.c.b16 %v1494, %v1493
  %v1505 = vpack.c.b16 %v1496, %v1495
  %v1506 = vpack.c.b16 %v1498, %v1497
  %1515 = vmatprep.subr.bf16.mxu0 0
  %1516 = vmatpush1.bf16.msra.mxu0 %v1499
  %1517 = vmatprep.subr.bf16.mxu0 0
  %1518 = vmatpush1.bf16.msra.mxu0 %v1500
  %1519 = vmatprep.subr.bf16.mxu0 0
  %1520 = vmatpush1.bf16.msra.mxu0 %v1501
  %1521 = vmatprep.subr.bf16.mxu0 0
  %1522 = vmatpush1.bf16.msra.mxu0 %v1502
  %1523 = vmatprep.subr.bf16.mxu0 0
  %1524 = vmatpush1.bf16.msra.mxu0 %v1503
  %1525 = vmatprep.subr.bf16.mxu0 0
  %1526 = vmatpush1.bf16.msra.mxu0 %v1504
  %1527 = vmatprep.subr.bf16.mxu0 0
  %1528 = vmatpush1.bf16.msra.mxu0 %v1505
  %1529 = vmatprep.subr.bf16.mxu0 0
  %1530 = vmatpush1.bf16.msra.mxu0 %v1506
  %1531 = vmatprep.subr.bf16.mxu0 0
  %1532 = vmatpush1.bf16.msra.mxu0 0
  %1533 = vmatprep.subr.bf16.mxu0 0
  %1534 = vmatpush1.bf16.msra.mxu0 0
  %1535 = vmatprep.subr.bf16.mxu0 0
  %1536 = vmatpush1.bf16.msra.mxu0 0
  %1537 = vmatprep.subr.bf16.mxu0 0
  %1538 = vmatpush1.bf16.msra.mxu0 0
  %1539 = vmatprep.subr.bf16.mxu0 0
  %1540 = vmatpush1.bf16.msra.mxu0 0
  %1541 = vmatprep.subr.bf16.mxu0 0
  %1542 = vmatpush1.bf16.msra.mxu0 0
  %1543 = vmatprep.subr.bf16.mxu0 0
  %1544 = vmatpush1.bf16.msra.mxu0 0
  %1545 = vmatprep.subr.bf16.mxu0 0
  %1546 = vmatpush1.bf16.msra.mxu0 0
  %1547 = vmatprep.mubr.bf16.mxu0 0
  %1548 = vmatmul.mubr.bf16.gmra.mrb[0].mxu0 %v1443
  %v1549 = vpop.f32.mrb[0].mxu0
  %v1550 = vadd.f32 %v1465, %v1549
  %v1551 = vpop.f32.mrb[0].mxu0
  %v1552 = vpop.f32.mrb[0].mxu0
  %v1553 = vpop.f32.mrb[0].mxu0
  %1554 = vdwg.mxu0
  %v1555 = vmax.f32 %v1550, 0.0
  %v1556 = vpack.c.bf16 %v1555, %v1555
  %v1557 = vld [vmem:[%s5] sm:$0xf]
  %v1558 = vld [vmem:[%s5 + $0x4] sm:$0xf]
  %v1559 = vld [vmem:[%s5 + $0x8] sm:$0xf]
  %v1560 = vld [vmem:[%s5 + $0xc] sm:$0xf]
  %v1561 = vld [vmem:[%s5 + $0x10] sm:$0xf]
  %v1562 = vld [vmem:[%s5 + $0x14] sm:$0xf]
  %v1563 = vld [vmem:[%s5 + $0x18] sm:$0xf]
  %v1564 = vld [vmem:[%s5 + $0x1c] sm:$0xf]
  %v1565 = vld [vmem:[%s5 + $0x20] sm:$0xf]
  %v1566 = vld [vmem:[%s5 + $0x24] sm:$0xf]
  %v1567 = vld [vmem:[%s5 + $0x28] sm:$0xf]
  %v1568 = vld [vmem:[%s5 + $0x2c] sm:$0xf]
  %v1569 = vld [vmem:[%s5 + $0x30] sm:$0xf]
  %v1570 = vld [vmem:[%s5 + $0x34] sm:$0xf]
  %v1571 = vld [vmem:[%s5 + $0x38] sm:$0xf]
  %v1572 = vld [vmem:[%s5 + $0x3c] sm:$0xf]
  %v1573 = vld [vmem:[%s6] sm:$0x1]
  %v1575 = vlaneseq
  %v1576 = vshrl.u32 %v1575, 7
  %v1577 = vsub.s32 0, %v1576
  %v1578 = vrot.slane %v1573, %v1577
  %v1596 = vunpack.c.l.b16 %v1557
  %v1597 = vunpack.c.l.b16 %v1558
  %v1598 = vunpack.c.l.b16 %v1559
  %v1599 = vunpack.c.l.b16 %v1560
  %v1600 = vunpack.c.l.b16 %v1561
  %v1601 = vunpack.c.l.b16 %v1562
  %v1602 = vunpack.c.l.b16 %v1563
  %v1603 = vunpack.c.l.b16 %v1564
  %v1604 = vunpack.c.l.b16 %v1565
  %v1605 = vunpack.c.l.b16 %v1566
  %v1606 = vunpack.c.l.b16 %v1567
  %v1607 = vunpack.c.l.b16 %v1568
  %v1608 = vunpack.c.l.b16 %v1569
  %v1609 = vunpack.c.l.b16 %v1570
  %v1610 = vunpack.c.l.b16 %v1571
  %v1611 = vunpack.c.l.b16 %v1572
  %v1612 = vpack.c.b16 %v1597, %v1596
  %v1613 = vpack.c.b16 %v1599, %v1598
  %v1614 = vpack.c.b16 %v1601, %v1600
  %v1615 = vpack.c.b16 %v1603, %v1602
  %v1616 = vpack.c.b16 %v1605, %v1604
  %v1617 = vpack.c.b16 %v1607, %v1606
  %v1618 = vpack.c.b16 %v1609, %v1608
  %v1619 = vpack.c.b16 %v1611, %v1610
  %1628 = vmatprep.subr.bf16.mxu0 0
  %1629 = vmatpush1.bf16.msra.mxu0 %v1612
  %1630 = vmatprep.subr.bf16.mxu0 0
  %1631 = vmatpush1.bf16.msra.mxu0 %v1613
  %1632 = vmatprep.subr.bf16.mxu0 0
  %1633 = vmatpush1.bf16.msra.mxu0 %v1614
  %1634 = vmatprep.subr.bf16.mxu0 0
  %1635 = vmatpush1.bf16.msra.mxu0 %v1615
  %1636 = vmatprep.subr.bf16.mxu0 0
  %1637 = vmatpush1.bf16.msra.mxu0 %v1616
  %1638 = vmatprep.subr.bf16.mxu0 0
  %1639 = vmatpush1.bf16.msra.mxu0 %v1617
  %1640 = vmatprep.subr.bf16.mxu0 0
  %1641 = vmatpush1.bf16.msra.mxu0 %v1618
  %1642 = vmatprep.subr.bf16.mxu0 0
  %1643 = vmatpush1.bf16.msra.mxu0 %v1619
  %1644 = vmatprep.subr.bf16.mxu0 0
  %1645 = vmatpush1.bf16.msra.mxu0 0
  %1646 = vmatprep.subr.bf16.mxu0 0
  %1647 = vmatpush1.bf16.msra.mxu0 0
  %1648 = vmatprep.subr.bf16.mxu0 0
  %1649 = vmatpush1.bf16.msra.mxu0 0
  %1650 = vmatprep.subr.bf16.mxu0 0
  %1651 = vmatpush1.bf16.msra.mxu0 0
  %1652 = vmatprep.subr.bf16.mxu0 0
  %1653 = vmatpush1.bf16.msra.mxu0 0
  %1654 = vmatprep.subr.bf16.mxu0 0
  %1655 = vmatpush1.bf16.msra.mxu0 0
  %1656 = vmatprep.subr.bf16.mxu0 0
  %1657 = vmatpush1.bf16.msra.mxu0 0
  %1658 = vmatprep.subr.bf16.mxu0 0
  %1659 = vmatpush1.bf16.msra.mxu0 0
  %1660 = vmatprep.mubr.bf16.mxu0 0
  %1661 = vmatmul.mubr.bf16.gmra.mrb[0].mxu0 %v1556
  %v1662 = vpop.f32.mrb[0].mxu0
  %v1663 = vadd.f32 %v1578, %v1662
  %v1664 = vpop.f32.mrb[0].mxu0
  %v1665 = vpop.f32.mrb[0].mxu0
  %v1666 = vpop.f32.mrb[0].mxu0
  %1667 = vdwg.mxu0
  %1668 = vst [vmem:[%s7] sm:$0xff] %v1663
  // Predicated region
  $region30: #{lenet5_forward.5} parent=0 // pred_check
    _
  $region31: #{lenet5_forward.5} parent=0 // pred_check_branch
    %1670 = sbr.rel (0) target = $region33
  $region32: #{lenet5_forward.5} parent=0 // pred_region
    _
  $region33: #{lenet5_forward.5} parent=0 // pred_fallthru
    _
  // Predicated region
  $region34: #{lenet5_forward.5} parent=0 // pred_check
    _
  $region35: #{lenet5_forward.5} parent=0 // pred_check_branch
    %1672 = sbr.rel (0) target = $region37
  $region36: #{lenet5_forward.5} parent=0 // pred_region
    _
  $region37: #{lenet5_forward.5} parent=0 // pred_fallthru
    _

</llo_original>
